<compile_context>
chip_gen: v7x
topology: tpu7x:2x2x1
jax: 0.10.0
libtpu: 0.0.40
codegen_flags: <defaults>
</compile_context>

<pallas_src>
import functools

import jax
import jax.numpy as jnp
import numpy as np
from jax import lax
from jax.experimental import pallas as pl
from jax.experimental.pallas import tpu as pltpu

_EPS = 1e-5         # nn.BatchNorm2d default
_NEG_SLOPE = 0.1    # nn.LeakyReLU(0.1)


def _round_up(x, m):
    return (x + m - 1) // m * m


def _vmem_budget_bytes():
    """~75% of physical VMEM: ~48 MiB on v7x (64 MiB), ~96 MiB on v5e/v6e (128 MiB)."""
    try:
        phys = int(pltpu.get_tpu_info().vmem_capacity_bytes)
    except Exception:
        phys = 64 * 1024 * 1024  # v7x per-core physical VMEM = smallest across generations
    return min((phys * 3) // 4, 112 * 1024 * 1024)


def _plan_fused(m, k_p, cout_p, budget):
    """Largest M tile such that the fully fused kernel (y resident in VMEM) fits."""
    for cand in (1024, 512, 256, 128, 64, 32, 16, 8):
        tm = min(cand, _round_up(m, 8))
        m_p = _round_up(m, tm)
        need = (2 * tm * k_p * 2          # patches tiles (double-buffered, bf16)
                + 2 * k_p * cout_p * 2    # weight block (double-buffered, bf16)
                + 2 * cout_p * tm * 4     # transposed f32 output tiles (double-buffered)
                + m_p * cout_p * 2        # resident y scratch (bf16)
                + 2 * cout_p * 4          # gamma/beta block
                + 4 * 2 * cout_p * 4)     # stats + fold scratch
        if need <= budget:
            return tm, m_p
    return None


def _plan_two_pass(m, k_p, cout_p, budget, tk_cap=None):
    """(tm, m_p, tk) for the K-tiled two-pass fallback."""
    q = k_p // 128
    tk_cands = sorted({128 * d for d in range(1, q + 1) if q % d == 0}, reverse=True)
    tk_cands = [t for t in tk_cands if t <= 2048]
    if tk_cap is not None:
        tk_cands = [t for t in tk_cands if t <= tk_cap] or [128]
    for cand in (1024, 512, 256, 128, 64, 32, 16, 8):
        tm = min(cand, _round_up(m, 8))
        for tk in tk_cands:
            need = (2 * tm * tk * 2
                    + 2 * tk * cout_p * 2
                    + 2 * tm * cout_p * 2     # bf16 y output tiles
                    + tm * cout_p * 4         # f32 accumulator scratch
                    + 4 * cout_p * 4)
            if need <= budget:
                return tm, _round_up(m, tm), tk
    tm = min(128, _round_up(m, 8))
    return tm, _round_up(m, tm), min(tk_cands)


def _plan_pass2_tile(m_p, cout_p, budget, tm_start):
    """Grow the pure-elementwise pass-2 tile while it divides m_p and fits VMEM."""
    tm2 = tm_start
    while m_p % (tm2 * 2) == 0 and tm2 * 2 <= 4096:
        cand = tm2 * 2
        need = 2 * cand * cout_p * 2 + 2 * cout_p * cand * 4 + 4 * cout_p * 4
        if need > budget:
            break
        tm2 = cand
    return tm2


# ----------------------- Fused kernel: conv + BN stats + BN affine + LeakyReLU -----------------------
def _fused_conv_bn_act_kernel(patches_ref, w_ref, gb_ref, out_ref,
                              y_sc, stats_sc, fold_sc, *, tm, inv_m):
    p = pl.program_id(0)   # phase: 0 = matmul + stats, 1 = affine + activation
    i = pl.program_id(1)   # M tile

    @pl.when(jnp.logical_and(p == 0, i == 0))
    def _():
        stats_sc[...] = jnp.zeros_like(stats_sc)

    @pl.when(p == 0)
    def _():
        # bf16 inputs, f32 MXU accumulation.
        y = jnp.dot(patches_ref[...], w_ref[...], preferred_element_type=jnp.float32)
        # Per-channel sum / sum-of-squares (zero-padded rows contribute exactly 0).
        stats_sc[0:1, :] += jnp.sum(y, axis=0, keepdims=True)
        stats_sc[1:2, :] += jnp.sum(y * y, axis=0, keepdims=True)
        row0 = pl.multiple_of(i * tm, tm)
        y_sc[pl.ds(row0, tm), :] = y.astype(y_sc.dtype)

    @pl.when(jnp.logical_and(p == 1, i == 0))
    def _():
        # Fold BN into per-channel scale/shift. NOTE: E[x^2]-E[x]^2 form; fine here
        # (zero-mean-ish activations); switch to a shifted form if |mean| >> std.
        mean = stats_sc[0:1, :] * inv_m
        var = jnp.maximum(stats_sc[1:2, :] * inv_m - mean * mean, 0.0)
        scale = gb_ref[0:1, :] * lax.rsqrt(var + _EPS)
        fold_sc[0:1, :] = scale
        fold_sc[1:2, :] = gb_ref[1:2, :] - mean * scale

    @pl.when(p == 1)
    def _():
        row0 = pl.multiple_of(i * tm, tm)
        z = y_sc[pl.ds(row0, tm), :].astype(jnp.float32)
        z = z * fold_sc[0:1, :] + fold_sc[1:2, :]
        z = jnp.where(z >= 0, z, _NEG_SLOPE * z)
        out_ref[...] = z.T   # transposed (Cout_pad, tm) store -> cheap NCHW epilogue


# ----------------------- Two-pass fallback -----------------------
def _conv_stats_kernel(patches_ref, w_ref, y_ref, stats_ref, acc_ref):
    i = pl.program_id(0)
    k = pl.program_id(1)
    nk = pl.num_programs(1)

    @pl.when(jnp.logical_and(i == 0, k == 0))
    def _():
        stats_ref[...] = jnp.zeros_like(stats_ref)

    @pl.when(k == 0)
    def _():
        acc_ref[...] = jnp.zeros_like(acc_ref)

    acc_ref[...] += jnp.dot(patches_ref[...], w_ref[...], preferred_element_type=jnp.float32)

    @pl.when(k == nk - 1)
    def _():
        y = acc_ref[...]
        stats_ref[0:1, :] += jnp.sum(y, axis=0, keepdims=True)
        stats_ref[1:2, :] += jnp.sum(y * y, axis=0, keepdims=True)
        y_ref[...] = y.astype(y_ref.dtype)   # bf16 -> half the HBM bytes for the round trip


def _bn_act_kernel(y_ref, scale_ref, shift_ref, out_ref):
    z = y_ref[...].astype(jnp.float32) * scale_ref[...] + shift_ref[...]
    z = jnp.where(z >= 0, z, _NEG_SLOPE * z)
    out_ref[...] = z.T


def _im2col_bf16(x, kh, kw, stride, padding):
    # x: (N, C, H, W) -> patches (N*OH*OW, C*kh*kw) bf16, K flattened as (C, kh, kw).
    # TODO(synk): fuse this into the kernel (halo DMA) to remove the KH*KW HBM amplification.
    n, c, h, w = x.shape
    xp = jnp.pad(x, ((0, 0), (0, 0), (padding, padding), (padding, padding)))
    oh = (h + 2 * padding - kh) // stride + 1
    ow = (w + 2 * padding - kw) // stride + 1
    cols = []
    for i in range(kh):
        for j in range(kw):
            cols.append(xp[:, :, i: i + stride * oh: stride, j: j + stride * ow: stride])
    patches = jnp.stack(cols, axis=2)                    # (N, C, kh*kw, OH, OW)
    patches = patches.reshape(n, c * kh * kw, oh, ow)    # (N, K, OH, OW)
    patches = patches.transpose(0, 2, 3, 1).reshape(n * oh * ow, c * kh * kw)
    return patches.astype(jnp.bfloat16), oh, ow


@functools.partial(jax.jit,
                   static_argnames=("kernel_size", "stride", "padding",
                                    "force_two_pass", "tk_cap"))
def conv_block(x, weight, bias, gamma, beta, *, kernel_size, stride, padding,
               force_two_pass=False, tk_cap=None):
    """ConvBlock forward. x: (N, Cin, H, W) NCHW, weight: (Cout, Cin, KH, KW). Returns NCHW f32."""
    del bias  # conv bias is exactly cancelled by the train-mode BatchNorm mean subtraction
    n, cin, h, w = x.shape
    cout = weight.shape[0]
    kh = kw = kernel_size

    patches, oh, ow = _im2col_bf16(x.astype(jnp.bfloat16), kh, kw, stride, padding)
    m, k = patches.shape

    # Lane/MXU-friendly padding (128 granularity; do NOT over-pad tiny Cout/K beyond 128).
    k_p = _round_up(k, 128)
    cout_p = _round_up(cout, 128)
    budget = _vmem_budget_bytes()

    w_mat = weight.reshape(cout, cin * kh * kw).T.astype(jnp.bfloat16)   # (K, Cout)
    w_p = jnp.pad(w_mat, ((0, k_p - k), (0, cout_p - cout)))
    gamma_p = jnp.pad(gamma.astype(jnp.float32).reshape(1, cout), ((0, 0), (0, cout_p - cout)))
    beta_p = jnp.pad(beta.astype(jnp.float32).reshape(1, cout), ((0, 0), (0, cout_p - cout)))
    gb = jnp.concatenate([gamma_p, beta_p], axis=0)                      # (2, Cout_pad)

    fused_plan = None if force_two_pass else _plan_fused(m, k_p, cout_p, budget)

    if fused_plan is not None:
        # ---------------- Fully fused path: y never leaves VMEM ----------------
        tm, m_p = fused_plan
        n_tiles = m_p // tm
        patches_p = jnp.pad(patches, ((0, m_p - m), (0, k_p - k)))

        out_t = pl.pallas_call(
            functools.partial(_fused_conv_bn_act_kernel, tm=tm, inv_m=1.0 / m),
            out_shape=jax.ShapeDtypeStruct((cout_p, m_p), jnp.float32),
            grid_spec=pltpu.PrefetchScalarGridSpec(
                num_scalar_prefetch=0,
                grid=(2, n_tiles),
                in_specs=[
                    # phase 1 keeps pointing at the last fetched block -> no extra DMA
                    pl.BlockSpec((tm, k_p),
                                 lambda p, i: (i * (1 - p) + (n_tiles - 1) * p, 0)),
                    pl.BlockSpec((k_p, cout_p), lambda p, i: (0, 0)),
                    pl.BlockSpec((2, cout_p), lambda p, i: (0, 0)),
                ],
                # phase 0 parks on block 0 (never written); phase 1 writes block i.
                out_specs=pl.BlockSpec((cout_p, tm), lambda p, i: (0, i * p)),
                scratch_shapes=[
                    pltpu.VMEM((m_p, cout_p), jnp.bfloat16),   # resident y
                    pltpu.VMEM((2, cout_p), jnp.float32),      # [sum, sum_sq]
                    pltpu.VMEM((2, cout_p), jnp.float32),      # [scale, shift]
                ],
            ),
            compiler_params=pltpu.CompilerParams(
                dimension_semantics=("arbitrary", "arbitrary"),
                vmem_limit_bytes=budget,
            ),
        )(patches_p, w_p, gb)
    else:
        # ---------------- Two-pass fallback: K-tiled matmul, bf16 y in HBM ----------------
        tm, m_p, tk = _plan_two_pass(m, k_p, cout_p, budget, tk_cap)
        n_tiles = m_p // tm
        nk = k_p // tk
        patches_p = jnp.pad(patches, ((0, m_p - m), (0, k_p - k)))

        y_bf16, stats = pl.pallas_call(
            _conv_stats_kernel,
            out_shape=(jax.ShapeDtypeStruct((m_p, cout_p), jnp.bfloat16),
                       jax.ShapeDtypeStruct((2, cout_p), jnp.float32)),
            grid_spec=pltpu.PrefetchScalarGridSpec(
                num_scalar_prefetch=0,
                grid=(n_tiles, nk),
                in_specs=[pl.BlockSpec((tm, tk), lambda i, kk: (i, kk)),
                          pl.BlockSpec((tk, cout_p), lambda i, kk: (kk, 0))],
                out_specs=[pl.BlockSpec((tm, cout_p), lambda i, kk: (i, 0)),
                           pl.BlockSpec((2, cout_p), lambda i, kk: (0, 0))],
                scratch_shapes=[pltpu.VMEM((tm, cout_p), jnp.float32)],
            ),
            compiler_params=pltpu.CompilerParams(
                dimension_semantics=("arbitrary", "arbitrary"),
                vmem_limit_bytes=budget,
            ),
        )(patches_p, w_p)

        # Tiny Cout-sized BN fold in plain JAX.
        inv_m = 1.0 / m
        mean = stats[0:1, :] * inv_m
        var = jnp.maximum(stats[1:2, :] * inv_m - mean * mean, 0.0)
        scale = gb[0:1, :] * lax.rsqrt(var + _EPS)
        shift = gb[1:2, :] - mean * scale

        tm2 = _plan_pass2_tile(m_p, cout_p, budget, tm)
        out_t = pl.pallas_call(
            _bn_act_kernel,
            out_shape=jax.ShapeDtypeStruct((cout_p, m_p), jnp.float32),
            grid_spec=pltpu.PrefetchScalarGridSpec(
                num_scalar_prefetch=0,
                grid=(m_p // tm2,),
                in_specs=[pl.BlockSpec((tm2, cout_p), lambda i: (i, 0)),
                          pl.BlockSpec((1, cout_p), lambda i: (0, 0)),
                          pl.BlockSpec((1, cout_p), lambda i: (0, 0))],
                out_specs=pl.BlockSpec((cout_p, tm2), lambda i: (0, i)),
            ),
            compiler_params=pltpu.CompilerParams(
                dimension_semantics=("parallel",),
                vmem_limit_bytes=budget,
            ),
        )(y_bf16, scale, shift)

    # (Cout_pad, M_pad) -> slice padding -> (Cout, N, OH, OW) -> NCHW.
    # Leading-dims transpose only (contiguous OHxOW inner blocks), much cheaper than NHWC->NCHW.
    return out_t[:cout, :m].reshape(cout, n, oh, ow).transpose(1, 0, 2, 3)


def _reference(x, weight, bias, gamma, beta, stride, padding):
    # Pure-JAX f32 reference: conv2d (with bias) + train-mode BN + LeakyReLU(0.1)
    y = lax.conv_general_dilated(
        x.astype(jnp.float32), weight.astype(jnp.float32),
        window_strides=(stride, stride),
        padding=[(padding, padding), (padding, padding)],
        dimension_numbers=("NCHW", "OIHW", "NCHW"),
    ) + bias.reshape(1, -1, 1, 1)
    mean = jnp.mean(y, axis=(0, 2, 3), keepdims=True)
    var = jnp.mean((y - mean) ** 2, axis=(0, 2, 3), keepdims=True)
    y = (y - mean) * lax.rsqrt(var + _EPS)
    y = y * gamma.reshape(1, -1, 1, 1) + beta.reshape(1, -1, 1, 1)
    return jnp.where(y >= 0, y, _NEG_SLOPE * y)


if __name__ == "__main__":
    # ConvBlock(in_channels=4, out_channels=8, kernel_size=3, stride=1, padding=1)
    N, CIN, H, W = 2, 4, 16, 16
    COUT, KS, STRIDE, PAD = 8, 3, 1, 1

    key = jax.random.PRNGKey(0)
    kx, kw_, kb = jax.random.split(key, 3)
    x = jax.random.normal(kx, (N, CIN, H, W), dtype=jnp.float32)

    fan_in = CIN * KS * KS
    bound = 1.0 / np.sqrt(fan_in)
    weight = jax.random.uniform(kw_, (COUT, CIN, KS, KS), jnp.float32, -bound, bound)
    bias = jax.random.uniform(kb, (COUT,), jnp.float32, -bound, bound)
    gamma = jnp.ones((COUT,), jnp.float32)
    beta = jnp.zeros((COUT,), jnp.float32)

    out = conv_block(x, weight, bias, gamma, beta,
                     kernel_size=KS, stride=STRIDE, padding=PAD)
    out = jax.block_until_ready(out)
    ref = jax.block_until_ready(_reference(x, weight, bias, gamma, beta, STRIDE, PAD))
    assert out.shape == (N, COUT, H, W), out.shape
    np.testing.assert_allclose(np.asarray(out), np.asarray(ref), rtol=3e-2, atol=3e-2)

    # Second config exercises the K-tiled two-pass fallback (stride 2, K_pad=256, tk=128 -> 2 K tiles).
    N2, CIN2, H2, W2 = 2, 16, 16, 16
    COUT2, KS2, STRIDE2, PAD2 = 16, 3, 2, 1
    k2 = jax.random.split(jax.random.PRNGKey(1), 5)
    x2 = jax.random.normal(k2[0], (N2, CIN2, H2, W2), dtype=jnp.float32)
    fan2 = CIN2 * KS2 * KS2
    b2 = 1.0 / np.sqrt(fan2)
    w2 = jax.random.uniform(k2[1], (COUT2, CIN2, KS2, KS2), jnp.float32, -b2, b2)
    bias2 = jax.random.uniform(k2[2], (COUT2,), jnp.float32, -b2, b2)
    gamma2 = 1.0 + 0.1 * jax.random.normal(k2[3], (COUT2,), jnp.float32)
    beta2 = 0.1 * jax.random.normal(k2[4], (COUT2,), jnp.float32)
    out2 = conv_block(x2, w2, bias2, gamma2, beta2,
                      kernel_size=KS2, stride=STRIDE2, padding=PAD2,
                      force_two_pass=True, tk_cap=128)
    out2 = jax.block_until_ready(out2)
    ref2 = jax.block_until_ready(_reference(x2, w2, bias2, gamma2, beta2, STRIDE2, PAD2))
    assert out2.shape == (N2, COUT2, H2 // 2, W2 // 2), out2.shape
    np.testing.assert_allclose(np.asarray(out2), np.asarray(ref2), rtol=3e-2, atol=3e-2)

    print("KERNEL_OK")
</pallas_src>

<mosaic_0001>
module attributes {stable_mosaic.version = 11 : i64} {
  func.func @_fused_conv_bn_act_kernel(%arg0: i32, %arg1: i32, %arg2: memref<512x128xbf16, #tpu.memory_space<vmem>>, %arg3: memref<128x128xbf16, #tpu.memory_space<vmem>>, %arg4: memref<2x128xf32, #tpu.memory_space<vmem>>, %arg5: memref<128x512xf32, #tpu.memory_space<vmem>>, %arg6: memref<512x128xbf16, #tpu.memory_space<vmem>>, %arg7: memref<2x128xf32, #tpu.memory_space<vmem>>, %arg8: memref<2x128xf32, #tpu.memory_space<vmem>>) attributes {dimension_semantics = [#tpu.dimension_semantics<arbitrary>, #tpu.dimension_semantics<arbitrary>], iteration_bounds = array<i64: 2, 1>, scalar_prefetch = 0 : i64, scratch_operands = 3 : i64, tpu.core_type = #tpu.core_type<tc>, window_params = [{transform_indices = @transform_0, window_bounds = array<i64: 512, 128>}, {pipeline_mode = #tpu.pipeline_mode<synchronous>, transform_indices = @transform_1, window_bounds = array<i64: 128, 128>}, {pipeline_mode = #tpu.pipeline_mode<synchronous>, transform_indices = @transform_2, window_bounds = array<i64: 2, 128>}, {transform_indices = @transform_3, window_bounds = array<i64: 128, 512>}]} {
    %c0_i32 = arith.constant 0 : i32
    %0 = arith.cmpi eq, %arg0, %c0_i32 : i32
    %c0_i32_0 = arith.constant 0 : i32
    %1 = arith.cmpi eq, %arg1, %c0_i32_0 : i32
    %2 = arith.andi %0, %1 : i1
    %3 = arith.extui %2 : i1 to i32
    %c0_i32_1 = arith.constant 0 : i32
    %4 = arith.cmpi ne, %3, %c0_i32_1 : i32
    scf.if %4 {
      %cst = arith.constant 0.000000e+00 : f32
      %16 = vector.broadcast %cst : f32 to vector<2x128xf32>
      %c0 = arith.constant 0 : index
      %c0_8 = arith.constant 0 : index
      %17 = vector.load %arg7[%c0, %c0_8] : memref<2x128xf32, #tpu.memory_space<vmem>>, vector<2x128xf32>
      tpu.vector_store %arg7[%c0, %c0_8], %16 {strides = array<i32>} : memref<2x128xf32, #tpu.memory_space<vmem>>, vector<2x128xf32>,
    } else {
    }
    %c0_i32_2 = arith.constant 0 : i32
    %5 = arith.cmpi eq, %arg0, %c0_i32_2 : i32
    %6 = arith.extui %5 : i1 to i32
    %c0_i32_3 = arith.constant 0 : i32
    %7 = arith.cmpi ne, %6, %c0_i32_3 : i32
    scf.if %7 {
      %c0 = arith.constant 0 : index
      %c0_8 = arith.constant 0 : index
      %16 = vector.load %arg2[%c0, %c0_8] : memref<512x128xbf16, #tpu.memory_space<vmem>>, vector<512x128xbf16>
      %c0_9 = arith.constant 0 : index
      %c0_10 = arith.constant 0 : index
      %17 = vector.load %arg3[%c0_9, %c0_10] : memref<128x128xbf16, #tpu.memory_space<vmem>>, vector<128x128xbf16>
      %cst = arith.constant dense<0.000000e+00> : vector<512x128xf32>
      %18 = tpu.matmul %16, %17, %cst {dimension_numbers = #tpu.dot_dimension_numbers<[1], [0], [0], [1], [0, 0, 1, 1], [], []>} : vector<512x128xbf16>, vector<128x128xbf16>, vector<512x128xf32> -> vector<512x128xf32>
      %c0_11 = arith.constant 0 : index
      %c0_12 = arith.constant 0 : index
      %19 = vector.load %arg7[%c0_11, %c0_12] : memref<2x128xf32, #tpu.memory_space<vmem>>, vector<1x128xf32>
      %cst_13 = arith.constant dense<0.000000e+00> : vector<128xf32>
      %20 = vector.multi_reduction <add>, %18, %cst_13 [0] : vector<512x128xf32> to vector<128xf32>
      %21 = vector.shape_cast %20 : vector<128xf32> to vector<1x128xf32>
      %22 = arith.addf %19, %21 : vector<1x128xf32>
      %c0_14 = arith.constant 0 : index
      %c0_15 = arith.constant 0 : index
      %23 = vector.load %arg7[%c0_14, %c0_15] : memref<2x128xf32, #tpu.memory_space<vmem>>, vector<1x128xf32>
      tpu.vector_store %arg7[%c0_14, %c0_15], %22 {strides = array<i32>} : memref<2x128xf32, #tpu.memory_space<vmem>>, vector<1x128xf32>,
      %c1 = arith.constant 1 : index
      %c0_16 = arith.constant 0 : index
      %24 = vector.load %arg7[%c1, %c0_16] : memref<2x128xf32, #tpu.memory_space<vmem>>, vector<1x128xf32>
      %25 = arith.mulf %18, %18 : vector<512x128xf32>
      %cst_17 = arith.constant dense<0.000000e+00> : vector<128xf32>
      %26 = vector.multi_reduction <add>, %25, %cst_17 [0] : vector<512x128xf32> to vector<128xf32>
      %27 = vector.shape_cast %26 : vector<128xf32> to vector<1x128xf32>
      %28 = arith.addf %24, %27 : vector<1x128xf32>
      %c1_18 = arith.constant 1 : index
      %c0_19 = arith.constant 0 : index
      %29 = vector.load %arg7[%c1_18, %c0_19] : memref<2x128xf32, #tpu.memory_space<vmem>>, vector<1x128xf32>
      tpu.vector_store %arg7[%c1_18, %c0_19], %28 {strides = array<i32>} : memref<2x128xf32, #tpu.memory_space<vmem>>, vector<1x128xf32>,
      %c512_i32 = arith.constant 512 : i32
      %30 = arith.muli %arg1, %c512_i32 : i32
      %31 = tpu.assume_multiple %30, 512 : i32
      %32 = arith.truncf %18 : vector<512x128xf32> to vector<512x128xbf16>
      %33 = arith.index_cast %31 : i32 to index
      %c0_20 = arith.constant 0 : index
      %34 = vector.load %arg6[%33, %c0_20] : memref<512x128xbf16, #tpu.memory_space<vmem>>, vector<512x128xbf16>
      tpu.vector_store %arg6[%33, %c0_20], %32 {strides = array<i32>} : memref<512x128xbf16, #tpu.memory_space<vmem>>, vector<512x128xbf16>,
    } else {
    }
    %c1_i32 = arith.constant 1 : i32
    %8 = arith.cmpi eq, %arg0, %c1_i32 : i32
    %c0_i32_4 = arith.constant 0 : i32
    %9 = arith.cmpi eq, %arg1, %c0_i32_4 : i32
    %10 = arith.andi %8, %9 : i1
    %11 = arith.extui %10 : i1 to i32
    %c0_i32_5 = arith.constant 0 : i32
    %12 = arith.cmpi ne, %11, %c0_i32_5 : i32
    scf.if %12 {
      %c0 = arith.constant 0 : index
      %c0_8 = arith.constant 0 : index
      %16 = vector.load %arg7[%c0, %c0_8] : memref<2x128xf32, #tpu.memory_space<vmem>>, vector<1x128xf32>
      %cst = arith.constant 0.001953125 : f32
      %17 = vector.broadcast %cst : f32 to vector<1x128xf32>
      %18 = arith.mulf %16, %17 : vector<1x128xf32>
      %c1 = arith.constant 1 : index
      %c0_9 = arith.constant 0 : index
      %19 = vector.load %arg7[%c1, %c0_9] : memref<2x128xf32, #tpu.memory_space<vmem>>, vector<1x128xf32>
      %cst_10 = arith.constant 0.001953125 : f32
      %20 = vector.broadcast %cst_10 : f32 to vector<1x128xf32>
      %21 = arith.mulf %19, %20 : vector<1x128xf32>
      %22 = arith.mulf %18, %18 : vector<1x128xf32>
      %23 = arith.subf %21, %22 : vector<1x128xf32>
      %cst_11 = arith.constant 0.000000e+00 : f32
      %24 = vector.broadcast %cst_11 : f32 to vector<1x128xf32>
      %25 = arith.maximumf %23, %24 : vector<1x128xf32>
      %c0_12 = arith.constant 0 : index
      %c0_13 = arith.constant 0 : index
      %26 = vector.load %arg4[%c0_12, %c0_13] : memref<2x128xf32, #tpu.memory_space<vmem>>, vector<1x128xf32>
      %cst_14 = arith.constant 9.99999974E-6 : f32
      %27 = vector.broadcast %cst_14 : f32 to vector<1x128xf32>
      %28 = arith.addf %25, %27 : vector<1x128xf32>
      %29 = math.rsqrt %28 : vector<1x128xf32>
      %30 = arith.mulf %26, %29 : vector<1x128xf32>
      %c0_15 = arith.constant 0 : index
      %c0_16 = arith.constant 0 : index
      %31 = vector.load %arg8[%c0_15, %c0_16] : memref<2x128xf32, #tpu.memory_space<vmem>>, vector<1x128xf32>
      tpu.vector_store %arg8[%c0_15, %c0_16], %30 {strides = array<i32>} : memref<2x128xf32, #tpu.memory_space<vmem>>, vector<1x128xf32>,
      %c1_17 = arith.constant 1 : index
      %c0_18 = arith.constant 0 : index
      %32 = vector.load %arg4[%c1_17, %c0_18] : memref<2x128xf32, #tpu.memory_space<vmem>>, vector<1x128xf32>
      %33 = arith.mulf %18, %30 : vector<1x128xf32>
      %34 = arith.subf %32, %33 : vector<1x128xf32>
      %c1_19 = arith.constant 1 : index
      %c0_20 = arith.constant 0 : index
      %35 = vector.load %arg8[%c1_19, %c0_20] : memref<2x128xf32, #tpu.memory_space<vmem>>, vector<1x128xf32>
      tpu.vector_store %arg8[%c1_19, %c0_20], %34 {strides = array<i32>} : memref<2x128xf32, #tpu.memory_space<vmem>>, vector<1x128xf32>,
    } else {
    }
    %c1_i32_6 = arith.constant 1 : i32
    %13 = arith.cmpi eq, %arg0, %c1_i32_6 : i32
    %14 = arith.extui %13 : i1 to i32
    %c0_i32_7 = arith.constant 0 : i32
    %15 = arith.cmpi ne, %14, %c0_i32_7 : i32
    scf.if %15 {
      %c512_i32 = arith.constant 512 : i32
      %16 = arith.muli %arg1, %c512_i32 : i32
      %17 = tpu.assume_multiple %16, 512 : i32
      %18 = arith.index_cast %17 : i32 to index
      %c0 = arith.constant 0 : index
      %19 = vector.load %arg6[%18, %c0] : memref<512x128xbf16, #tpu.memory_space<vmem>>, vector<512x128xbf16>
      %20 = arith.extf %19 : vector<512x128xbf16> to vector<512x128xf32>
      %c0_8 = arith.constant 0 : index
      %c0_9 = arith.constant 0 : index
      %21 = vector.load %arg8[%c0_8, %c0_9] : memref<2x128xf32, #tpu.memory_space<vmem>>, vector<1x128xf32>
      %22 = vector.broadcast %21 : vector<1x128xf32> to vector<512x128xf32>
      %23 = arith.mulf %20, %22 : vector<512x128xf32>
      %c1 = arith.constant 1 : index
      %c0_10 = arith.constant 0 : index
      %24 = vector.load %arg8[%c1, %c0_10] : memref<2x128xf32, #tpu.memory_space<vmem>>, vector<1x128xf32>
      %25 = vector.broadcast %24 : vector<1x128xf32> to vector<512x128xf32>
      %26 = arith.addf %23, %25 : vector<512x128xf32>
      %cst = arith.constant 0.000000e+00 : f32
      %27 = vector.broadcast %cst : f32 to vector<512x128xf32>
      %28 = arith.cmpf oge, %26, %27 : vector<512x128xf32>
      %cst_11 = arith.constant 1.000000e-01 : f32
      %29 = vector.broadcast %cst_11 : f32 to vector<512x128xf32>
      %30 = arith.mulf %29, %26 : vector<512x128xf32>
      %31 = arith.select %28, %26, %30 : vector<512x128xi1>, vector<512x128xf32>
      %32 = tpu.transpose %31, [1, 0] : vector<512x128xf32> -> vector<128x512xf32>
      %c0_12 = arith.constant 0 : index
      %c0_13 = arith.constant 0 : index
      %33 = vector.load %arg5[%c0_12, %c0_13] : memref<128x512xf32, #tpu.memory_space<vmem>>, vector<128x512xf32>
      tpu.vector_store %arg5[%c0_12, %c0_13], %32 {strides = array<i32>} : memref<128x512xf32, #tpu.memory_space<vmem>>, vector<128x512xf32>,
    } else {
    }
    return
  }
  func.func @transform_0(%arg0: i32, %arg1: i32) -> (i32, i32) {
    %c1_i32 = arith.constant 1 : i32
    %0 = arith.subi %c1_i32, %arg0 : i32
    %1 = arith.muli %arg1, %0 : i32
    %c0_i32 = arith.constant 0 : i32
    %2 = arith.muli %c0_i32, %arg0 : i32
    %3 = arith.addi %1, %2 : i32
    %c0_i32_0 = arith.constant 0 : i32
    %c0_i32_1 = arith.constant 0 : i32
    return %3, %c0_i32_0 : i32, i32
  }
  func.func @transform_1(%arg0: i32, %arg1: i32) -> (i32, i32) {
    %c0_i32 = arith.constant 0 : i32
    %c0_i32_0 = arith.constant 0 : i32
    %c0_i32_1 = arith.constant 0 : i32
    return %c0_i32, %c0_i32_0 : i32, i32
  }
  func.func @transform_2(%arg0: i32, %arg1: i32) -> (i32, i32) {
    %c0_i32 = arith.constant 0 : i32
    %c0_i32_0 = arith.constant 0 : i32
    %c0_i32_1 = arith.constant 0 : i32
    return %c0_i32, %c0_i32_0 : i32, i32
  }
  func.func @transform_3(%arg0: i32, %arg1: i32) -> (i32, i32) {
    %0 = arith.muli %arg1, %arg0 : i32
    %c0_i32 = arith.constant 0 : i32
    %c0_i32_0 = arith.constant 0 : i32
    return %c0_i32, %0 : i32, i32
  }
}

</mosaic_0001>

<llo_original>
// kernel: conv_block.1
$region0: #{conv_block.1}
  #allocation0 [shape = 'u32[]', space=smem, size = 0x4, offset = 0x4, fixed_abs, tag = 'smem constant byte address 0x4 - core index']
  #allocation1 [shape = 'u32[144,128]{1,0:T(1,128)}', space=vmem, size = 0x12000, scoped, tag = 'internal scratch']
  #allocation2 [shape = 'bf16[512,128]{1,0:T(16,128)(2,1)}', space=vmem, size = 0x20000, scoped, tag = 'scratch operand']
  #allocation3 [shape = 'f32[2,128]{1,0:T(2,128)}', space=vmem, size = 0x400, scoped, tag = 'scratch operand']
  #allocation4 [shape = 'f32[2,128]{1,0:T(2,128)}', space=vmem, size = 0x400, scoped, tag = 'scratch operand']
  %s0 = inlined_call_operand.vmem [shape: bf16[512,128], index: 0, kind: input, shape index: {}]
  %s1 = inlined_call_operand.vmem [shape: bf16[128,128], index: 1, kind: input, shape index: {}]
  %s2 = inlined_call_operand.vmem [shape: f32[2,128], index: 2, kind: input, shape index: {}]
  %s3 = inlined_call_operand.vmem [shape: f32[128,512], index: 3, kind: output, shape index: {}]
  %s4 = sld [smem:[#allocation0]]
  $region61: #{conv_block.1} parent=0
    _
  %s6 = ssub.s32 1, %s4
  %s7 = scalar_select 0, %s6, %s4
  loop: start=0, step=1, limit=4
  $region2: #{conv_block.1} parent=0 // loop_pre_header
    _
  $region3: #{conv_block.1} parent=0 // loop_header
    %s9 = sphi 0, %s13
    %p10 = scmp.ge.s32.totalorder %s9, 4
    %s16 = sphi 0, %s28
    %s17 = sphi 0, %s24
    %s18 = sphi 0, %s16
    %s19 = sphi 0, %s17
    %s20 = sphi 0, %s18
    %s21 = sphi 0, %s19
    %s35 = sphi 0, %s37
    %s38 = sphi 0, %s35
    %s39 = sphi 0, %s38
    %s55 = sphi 0, %s39
    %s59 = sphi 0, %s59
    %s61 = sphi 0, %s59
    %s62 = sphi 0, %s61
    %s76 = sphi 0, %s62
    %s80 = sphi 0, %s80
    %s82 = sphi 0, %s80
    %s83 = sphi 0, %s82
    %s97 = sphi 0, %s83
    %s105 = sphi 0, %s107
    %s108 = sphi 0, %s105
    %s109 = sphi 0, %s108
    %s125 = sphi 0, %s109
  $region4: #{conv_block.1} parent=0 // loop_header_branch
    %12 = sbr.rel (%p10) target = $region8
  $region5: #{conv_block.1} parent=0 // loop_body
    %s14 = ssub.s32 %s9, 1
    %s15 = ssub.s32 %s9, 2
    %s22 = sadd.s32 1, %s17
    %p23 = scmp.ge.s32.totalorder %s22, 1
    %s24 = scalar_select %p23, 0, %s22
    %s25 = sadd.s32 1, %s16
    %s26 = scalar_select %p23, %s25, %s16
    %p27 = scmp.ge.s32.totalorder %s26, 2
    %s28 = scalar_select %p27, 0, %s26
    %s29 = ssub.s32 1, %s16
    %s30 = smul.u32 %s17, %s29
    %s31 = ssub.s32 1, %s28
    %s32 = smul.u32 %s24, %s31
    %s33 = ssub.s32 %s30, %s32
    %p34 = scmp.eq.s32.totalorder %s33, 0
    %s36 = sadd.s32 %s35, 1
    %s37 = scalar_select %p34, %s35, %s36
    %p40 = pneg %p34
    %p41 = scmp.eq.s32.totalorder %s9, 1
    %p42 = por %p40, %p41
    %p43 = scmp.ne.s32.totalorder %s35, %s38
    %p44 = scmp.eq.s32.totalorder %s9, 0
    %p45 = por %p43, %p44
    %p46 = scmp.ne.s32.totalorder %s35, %s38
    %p47 = scmp.eq.s32.totalorder %s14, 1
    %p48 = por %p46, %p47
    %p49 = scmp.ne.s32.totalorder %s38, %s39
    %p50 = scmp.eq.s32.totalorder %s14, 0
    %p51 = por %p49, %p50
    %p52 = scmp.ne.s32.totalorder %s38, %s39
    %p53 = scmp.eq.s32.totalorder %s15, 1
    %p54 = por %p52, %p53
    %p56 = scmp.ne.s32.totalorder %s39, %s55
    %p57 = scmp.eq.s32.totalorder %s15, 0
    %p58 = por %p56, %p57
    %s60 = sadd.s32 %s59, 1
    %p63 = scmp.eq.s32.totalorder %s9, 1
    %p64 = scmp.ne.s32.totalorder %s59, %s61
    %p65 = scmp.eq.s32.totalorder %s9, 0
    %p66 = por %p64, %p65
    %p67 = scmp.ne.s32.totalorder %s59, %s61
    %p68 = scmp.eq.s32.totalorder %s14, 1
    %p69 = por %p67, %p68
    %p70 = scmp.ne.s32.totalorder %s61, %s62
    %p71 = scmp.eq.s32.totalorder %s14, 0
    %p72 = por %p70, %p71
    %p73 = scmp.ne.s32.totalorder %s61, %s62
    %p74 = scmp.eq.s32.totalorder %s15, 1
    %p75 = por %p73, %p74
    %p77 = scmp.ne.s32.totalorder %s62, %s76
    %p78 = scmp.eq.s32.totalorder %s15, 0
    %p79 = por %p77, %p78
    %s81 = sadd.s32 %s80, 1
    %p84 = scmp.eq.s32.totalorder %s9, 1
    %p85 = scmp.ne.s32.totalorder %s80, %s82
    %p86 = scmp.eq.s32.totalorder %s9, 0
    %p87 = por %p85, %p86
    %p88 = scmp.ne.s32.totalorder %s80, %s82
    %p89 = scmp.eq.s32.totalorder %s14, 1
    %p90 = por %p88, %p89
    %p91 = scmp.ne.s32.totalorder %s82, %s83
    %p92 = scmp.eq.s32.totalorder %s14, 0
    %p93 = por %p91, %p92
    %p94 = scmp.ne.s32.totalorder %s82, %s83
    %p95 = scmp.eq.s32.totalorder %s15, 1
    %p96 = por %p94, %p95
    %p98 = scmp.ne.s32.totalorder %s83, %s97
    %p99 = scmp.eq.s32.totalorder %s15, 0
    %p100 = por %p98, %p99
    %s101 = smul.u32 %s17, %s16
    %s102 = smul.u32 %s24, %s28
    %s103 = ssub.s32 %s101, %s102
    %p104 = scmp.eq.s32.totalorder %s103, 0
    %s106 = sadd.s32 %s105, 1
    %s107 = scalar_select %p104, %s105, %s106
    %p110 = pneg %p104
    %p111 = scmp.eq.s32.totalorder %s9, 1
    %p112 = por %p110, %p111
    %p113 = scmp.ne.s32.totalorder %s105, %s108
    %p114 = scmp.eq.s32.totalorder %s9, 0
    %p115 = por %p113, %p114
    %p116 = scmp.ne.s32.totalorder %s105, %s108
    %p117 = scmp.eq.s32.totalorder %s14, 1
    %p118 = por %p116, %p117
    %p119 = scmp.ne.s32.totalorder %s108, %s109
    %p120 = scmp.eq.s32.totalorder %s14, 0
    %p121 = por %p119, %p120
    %p122 = scmp.ne.s32.totalorder %s108, %s109
    %p123 = scmp.eq.s32.totalorder %s15, 1
    %p124 = por %p122, %p123
    %p126 = scmp.ne.s32.totalorder %s109, %s125
    %p127 = scmp.eq.s32.totalorder %s15, 0
    %p128 = por %p126, %p127
    %p129 = scmp.le.s32.totalorder 1, %s9
    %p130 = scmp.lt.s32.totalorder %s9, 3
    %p131 = pnand %p129, %p130
    %p132 = pneg %p131
    // Predicated region
    $region9: #{conv_block.1} parent=5 // pred_check
      _
    $region10: #{conv_block.1} parent=5 // pred_check_branch
      %134 = sbr.rel (%p131) target = $region12
    $region11: #{conv_block.1} parent=5 // pred_region
      %s135 = ssub.s32 %s9, 1
      // Predicated region
      $region13: #{conv_block.1} parent=11 // pred_check
        %p136 = pneg %p72
      $region14: #{conv_block.1} parent=11 // pred_check_branch
        %138 = sbr.rel (%p136) target = $region16
      $region15: #{conv_block.1} parent=11 // pred_region
        _
      $region16: #{conv_block.1} parent=11 // pred_fallthru
        _
      // Predicated region
      $region17: #{conv_block.1} parent=11 // pred_check
        %p139 = pneg %p93
      $region18: #{conv_block.1} parent=11 // pred_check_branch
        %141 = sbr.rel (%p139) target = $region20
      $region19: #{conv_block.1} parent=11 // pred_region
        _
      $region20: #{conv_block.1} parent=11 // pred_fallthru
        _
    $region12: #{conv_block.1} parent=5 // pred_fallthru
      _
    %p142 = scmp.lt.s32.totalorder %s9, 2
    // Predicated region
    $region21: #{conv_block.1} parent=5 // pred_check
      %p143 = pneg %p142
    $region22: #{conv_block.1} parent=5 // pred_check_branch
      %145 = sbr.rel (%p143) target = $region24
    $region23: #{conv_block.1} parent=5 // pred_region
      // Predicated region
      $region25: #{conv_block.1} parent=23 // pred_check
        %p146 = pneg %p45
      $region26: #{conv_block.1} parent=23 // pred_check_branch
        %148 = sbr.rel (%p146) target = $region28
      $region27: #{conv_block.1} parent=23 // pred_region
        %s149 = ssub.s32 1, %s16
        %s150 = smul.u32 %s17, %s149
        %s151 = smul.u32 64, %s150
        %p152 = scmp.lt.s32.totalorder %s151, 63
        %s153 = scalar_select %p152, %s151, 63
        %s154 = smul.addr %s153, 4
        %s155 = scalar_lea.vmem %s0, %s154
        %s156 = ssub.s32 1, %s16
        %s157 = smul.u32 %s17, %s156
        %s158 = smul.u32 64, %s157
      $region28: #{conv_block.1} parent=23 // pred_fallthru
        _
    $region24: #{conv_block.1} parent=5 // pred_fallthru
      _
    %p159 = scmp.le.s32.totalorder 1, %s9
    %p160 = scmp.lt.s32.totalorder %s9, 3
    %p161 = pnand %p159, %p160
    %p162 = pneg %p161
    // Predicated region
    $region29: #{conv_block.1} parent=5 // pred_check
      _
    $region30: #{conv_block.1} parent=5 // pred_check_branch
      %164 = sbr.rel (%p161) target = $region32
    $region31: #{conv_block.1} parent=5 // pred_region
      %s165 = ssub.s32 %s9, 1
      %s166 = ssub.s32 1, %s18
      %s167 = smul.u32 %s19, %s166
      %s168 = smul.u32 64, %s167
      %p169 = scmp.lt.s32.totalorder %s168, 63
      %s170 = scalar_select %p169, %s168, 63
      %s171 = smul.addr %s170, 4
      %s172 = scalar_lea.vmem %s0, %s171
      %p173 = pneg %p51
      %p174 = pneg %p48
      %p175 = pneg %p72
      %p176 = pneg %p69
      %p177 = pneg %p93
      %p178 = pneg %p90
      %p179 = pneg %p121
      %p180 = pneg %p118
      %s181 = smul.u32 %s19, %s18
      %s182 = smul.u32 4, %s181
      %p183 = scmp.lt.s32.totalorder %s182, 3
      %s184 = scalar_select %p183, %s182, 3
      %s185 = smul.addr %s184, 8
      %s186 = scalar_lea.vmem %s3, %s185
      %s187 = ssub.s32 1, %s18
      %s188 = smul.u32 %s19, %s187
      %s189 = smul.u32 64, %s188
      %p190 = scmp.lt.s32.totalorder %s189, 63
      %s191 = scalar_select %p190, %s189, 63
      %s192 = smul.addr %s191, 4
      %s193 = scalar_lea.vmem %s0, %s192
      %s194 = ssub.s32 1, %s18
      %s195 = smul.u32 %s19, %s194
      %s196 = smul.u32 64, %s195
      %s197 = smul.u32 %s19, %s18
      %s198 = smul.u32 4, %s197
      %p199 = scmp.lt.s32.totalorder %s198, 3
      %s200 = scalar_select %p199, %s198, 3
      %s201 = smul.addr %s200, 8
      %s202 = scalar_lea.vmem %s3, %s201
      %s203 = smul.u32 %s19, %s18
      %s204 = smul.u32 4, %s203
      %p206 = scmp.eq.s32.totalorder %s18, 0
      %p207 = scmp.eq.s32.totalorder %s19, 0
      %p208 = pnand %p206, %p207
      %p209 = pneg %p208
      // Predicated region
      $region33: #{conv_block.1} parent=31 // pred_check
        _
      $region34: #{conv_block.1} parent=31 // pred_check_branch
        %211 = sbr.rel (%p208) target = $region36
      $region35: #{conv_block.1} parent=31 // pred_region
        %212 = vst [vmem:[#allocation3] sm:$0x3] 0.0
      $region36: #{conv_block.1} parent=31 // pred_fallthru
        _
      // Predicated region
      $region37: #{conv_block.1} parent=31 // pred_check
        %p213 = pneg %p206
      $region38: #{conv_block.1} parent=31 // pred_check_branch
        %215 = sbr.rel (%p213) target = $region40
      $region39: #{conv_block.1} parent=31 // pred_region
        %v216 = vld [vmem:[%s193] sm:$0xf]
        %v217 = vld [vmem:[%s193 + $0x4] sm:$0xf]
        %v218 = vld [vmem:[%s193 + $0x8] sm:$0xf]
        %v219 = vld [vmem:[%s193 + $0xc] sm:$0xf]
        %v220 = vld [vmem:[%s193 + $0x10] sm:$0xf]
        %v221 = vld [vmem:[%s193 + $0x14] sm:$0xf]
        %v222 = vld [vmem:[%s193 + $0x18] sm:$0xf]
        %v223 = vld [vmem:[%s193 + $0x1c] sm:$0xf]
        %v224 = vld [vmem:[%s193 + $0x20] sm:$0xf]
        %v225 = vld [vmem:[%s193 + $0x24] sm:$0xf]
        %v226 = vld [vmem:[%s193 + $0x28] sm:$0xf]
        %v227 = vld [vmem:[%s193 + $0x2c] sm:$0xf]
        %v228 = vld [vmem:[%s193 + $0x30] sm:$0xf]
        %v229 = vld [vmem:[%s193 + $0x34] sm:$0xf]
        %v230 = vld [vmem:[%s193 + $0x38] sm:$0xf]
        %v231 = vld [vmem:[%s193 + $0x3c] sm:$0xf]
        %v232 = vld [vmem:[%s193 + $0x40] sm:$0xf]
        %v233 = vld [vmem:[%s193 + $0x44] sm:$0xf]
        %v234 = vld [vmem:[%s193 + $0x48] sm:$0xf]
        %v235 = vld [vmem:[%s193 + $0x4c] sm:$0xf]
        %v236 = vld [vmem:[%s193 + $0x50] sm:$0xf]
        %v237 = vld [vmem:[%s193 + $0x54] sm:$0xf]
        %v238 = vld [vmem:[%s193 + $0x58] sm:$0xf]
        %v239 = vld [vmem:[%s193 + $0x5c] sm:$0xf]
        %v240 = vld [vmem:[%s193 + $0x60] sm:$0xf]
        %v241 = vld [vmem:[%s193 + $0x64] sm:$0xf]
        %v242 = vld [vmem:[%s193 + $0x68] sm:$0xf]
        %v243 = vld [vmem:[%s193 + $0x6c] sm:$0xf]
        %v244 = vld [vmem:[%s193 + $0x70] sm:$0xf]
        %v245 = vld [vmem:[%s193 + $0x74] sm:$0xf]
        %v246 = vld [vmem:[%s193 + $0x78] sm:$0xf]
        %v247 = vld [vmem:[%s193 + $0x7c] sm:$0xf]
        %v248 = vld [vmem:[%s193 + $0x80] sm:$0xf]
        %v249 = vld [vmem:[%s193 + $0x84] sm:$0xf]
        %v250 = vld [vmem:[%s193 + $0x88] sm:$0xf]
        %v251 = vld [vmem:[%s193 + $0x8c] sm:$0xf]
        %v252 = vld [vmem:[%s193 + $0x90] sm:$0xf]
        %v253 = vld [vmem:[%s193 + $0x94] sm:$0xf]
        %v254 = vld [vmem:[%s193 + $0x98] sm:$0xf]
        %v255 = vld [vmem:[%s193 + $0x9c] sm:$0xf]
        %v256 = vld [vmem:[%s193 + $0xa0] sm:$0xf]
        %v257 = vld [vmem:[%s193 + $0xa4] sm:$0xf]
        %v258 = vld [vmem:[%s193 + $0xa8] sm:$0xf]
        %v259 = vld [vmem:[%s193 + $0xac] sm:$0xf]
        %v260 = vld [vmem:[%s193 + $0xb0] sm:$0xf]
        %v261 = vld [vmem:[%s193 + $0xb4] sm:$0xf]
        %v262 = vld [vmem:[%s193 + $0xb8] sm:$0xf]
        %v263 = vld [vmem:[%s193 + $0xbc] sm:$0xf]
        %v264 = vld [vmem:[%s193 + $0xc0] sm:$0xf]
        %v265 = vld [vmem:[%s193 + $0xc4] sm:$0xf]
        %v266 = vld [vmem:[%s193 + $0xc8] sm:$0xf]
        %v267 = vld [vmem:[%s193 + $0xcc] sm:$0xf]
        %v268 = vld [vmem:[%s193 + $0xd0] sm:$0xf]
        %v269 = vld [vmem:[%s193 + $0xd4] sm:$0xf]
        %v270 = vld [vmem:[%s193 + $0xd8] sm:$0xf]
        %v271 = vld [vmem:[%s193 + $0xdc] sm:$0xf]
        %v272 = vld [vmem:[%s193 + $0xe0] sm:$0xf]
        %v273 = vld [vmem:[%s193 + $0xe4] sm:$0xf]
        %v274 = vld [vmem:[%s193 + $0xe8] sm:$0xf]
        %v275 = vld [vmem:[%s193 + $0xec] sm:$0xf]
        %v276 = vld [vmem:[%s193 + $0xf0] sm:$0xf]
        %v277 = vld [vmem:[%s193 + $0xf4] sm:$0xf]
        %v278 = vld [vmem:[%s193 + $0xf8] sm:$0xf]
        %v279 = vld [vmem:[%s193 + $0xfc] sm:$0xf]
        %v280 = vld [vmem:[%s1] sm:$0xf]
        %v281 = vld [vmem:[%s1 + $0x4] sm:$0xf]
        %v282 = vld [vmem:[%s1 + $0x8] sm:$0xf]
        %v283 = vld [vmem:[%s1 + $0xc] sm:$0xf]
        %v284 = vld [vmem:[%s1 + $0x10] sm:$0xf]
        %v285 = vld [vmem:[%s1 + $0x14] sm:$0xf]
        %v286 = vld [vmem:[%s1 + $0x18] sm:$0xf]
        %v287 = vld [vmem:[%s1 + $0x1c] sm:$0xf]
        %v288 = vld [vmem:[%s1 + $0x20] sm:$0xf]
        %v289 = vld [vmem:[%s1 + $0x24] sm:$0xf]
        %v290 = vld [vmem:[%s1 + $0x28] sm:$0xf]
        %v291 = vld [vmem:[%s1 + $0x2c] sm:$0xf]
        %v292 = vld [vmem:[%s1 + $0x30] sm:$0xf]
        %v293 = vld [vmem:[%s1 + $0x34] sm:$0xf]
        %v294 = vld [vmem:[%s1 + $0x38] sm:$0xf]
        %v295 = vld [vmem:[%s1 + $0x3c] sm:$0xf]
        %v360 = vunpack.c.l.b16 %v216
        %v361 = vunpack.c.l.b16 %v217
        %v362 = vunpack.c.l.b16 %v218
        %v363 = vunpack.c.l.b16 %v219
        %v364 = vunpack.c.l.b16 %v220
        %v365 = vunpack.c.l.b16 %v221
        %v366 = vunpack.c.l.b16 %v222
        %v367 = vunpack.c.l.b16 %v223
        %v368 = vunpack.c.l.b16 %v224
        %v369 = vunpack.c.l.b16 %v225
        %v370 = vunpack.c.l.b16 %v226
        %v371 = vunpack.c.l.b16 %v227
        %v372 = vunpack.c.l.b16 %v228
        %v373 = vunpack.c.l.b16 %v229
        %v374 = vunpack.c.l.b16 %v230
        %v375 = vunpack.c.l.b16 %v231
        %v376 = vunpack.c.l.b16 %v232
        %v377 = vunpack.c.l.b16 %v233
        %v378 = vunpack.c.l.b16 %v234
        %v379 = vunpack.c.l.b16 %v235
        %v380 = vunpack.c.l.b16 %v236
        %v381 = vunpack.c.l.b16 %v237
        %v382 = vunpack.c.l.b16 %v238
        %v383 = vunpack.c.l.b16 %v239
        %v384 = vunpack.c.l.b16 %v240
        %v385 = vunpack.c.l.b16 %v241
        %v386 = vunpack.c.l.b16 %v242
        %v387 = vunpack.c.l.b16 %v243
        %v388 = vunpack.c.l.b16 %v244
        %v389 = vunpack.c.l.b16 %v245
        %v390 = vunpack.c.l.b16 %v246
        %v391 = vunpack.c.l.b16 %v247
        %v392 = vunpack.c.l.b16 %v248
        %v393 = vunpack.c.l.b16 %v249
        %v394 = vunpack.c.l.b16 %v250
        %v395 = vunpack.c.l.b16 %v251
        %v396 = vunpack.c.l.b16 %v252
        %v397 = vunpack.c.l.b16 %v253
        %v398 = vunpack.c.l.b16 %v254
        %v399 = vunpack.c.l.b16 %v255
        %v400 = vunpack.c.l.b16 %v256
        %v401 = vunpack.c.l.b16 %v257
        %v402 = vunpack.c.l.b16 %v258
        %v403 = vunpack.c.l.b16 %v259
        %v404 = vunpack.c.l.b16 %v260
        %v405 = vunpack.c.l.b16 %v261
        %v406 = vunpack.c.l.b16 %v262
        %v407 = vunpack.c.l.b16 %v263
        %v408 = vunpack.c.l.b16 %v264
        %v409 = vunpack.c.l.b16 %v265
        %v410 = vunpack.c.l.b16 %v266
        %v411 = vunpack.c.l.b16 %v267
        %v412 = vunpack.c.l.b16 %v268
        %v413 = vunpack.c.l.b16 %v269
        %v414 = vunpack.c.l.b16 %v270
        %v415 = vunpack.c.l.b16 %v271
        %v416 = vunpack.c.l.b16 %v272
        %v417 = vunpack.c.l.b16 %v273
        %v418 = vunpack.c.l.b16 %v274
        %v419 = vunpack.c.l.b16 %v275
        %v420 = vunpack.c.l.b16 %v276
        %v421 = vunpack.c.l.b16 %v277
        %v422 = vunpack.c.l.b16 %v278
        %v423 = vunpack.c.l.b16 %v279
        %v424 = vpack.c.b16 %v361, %v360
        %v425 = vpack.c.b16 %v363, %v362
        %v426 = vpack.c.b16 %v365, %v364
        %v427 = vpack.c.b16 %v367, %v366
        %v428 = vpack.c.b16 %v369, %v368
        %v429 = vpack.c.b16 %v371, %v370
        %v430 = vpack.c.b16 %v373, %v372
        %v431 = vpack.c.b16 %v375, %v374
        %v432 = vpack.c.b16 %v377, %v376
        %v433 = vpack.c.b16 %v379, %v378
        %v434 = vpack.c.b16 %v381, %v380
        %v435 = vpack.c.b16 %v383, %v382
        %v436 = vpack.c.b16 %v385, %v384
        %v437 = vpack.c.b16 %v387, %v386
        %v438 = vpack.c.b16 %v389, %v388
        %v439 = vpack.c.b16 %v391, %v390
        %v440 = vpack.c.b16 %v393, %v392
        %v441 = vpack.c.b16 %v395, %v394
        %v442 = vpack.c.b16 %v397, %v396
        %v443 = vpack.c.b16 %v399, %v398
        %v444 = vpack.c.b16 %v401, %v400
        %v445 = vpack.c.b16 %v403, %v402
        %v446 = vpack.c.b16 %v405, %v404
        %v447 = vpack.c.b16 %v407, %v406
        %v448 = vpack.c.b16 %v409, %v408
        %v449 = vpack.c.b16 %v411, %v410
        %v450 = vpack.c.b16 %v413, %v412
        %v451 = vpack.c.b16 %v415, %v414
        %v452 = vpack.c.b16 %v417, %v416
        %v453 = vpack.c.b16 %v419, %v418
        %v454 = vpack.c.b16 %v421, %v420
        %v455 = vpack.c.b16 %v423, %v422
        %v504 = vunpack.c.l.b16 %v280
        %v505 = vunpack.c.l.b16 %v281
        %v506 = vunpack.c.l.b16 %v282
        %v507 = vunpack.c.l.b16 %v283
        %v508 = vunpack.c.l.b16 %v284
        %v509 = vunpack.c.l.b16 %v285
        %v510 = vunpack.c.l.b16 %v286
        %v511 = vunpack.c.l.b16 %v287
        %v512 = vunpack.c.l.b16 %v288
        %v513 = vunpack.c.l.b16 %v289
        %v514 = vunpack.c.l.b16 %v290
        %v515 = vunpack.c.l.b16 %v291
        %v516 = vunpack.c.l.b16 %v292
        %v517 = vunpack.c.l.b16 %v293
        %v518 = vunpack.c.l.b16 %v294
        %v519 = vunpack.c.l.b16 %v295
        %v520 = vpack.c.b16 %v505, %v504
        %v521 = vpack.c.b16 %v507, %v506
        %v522 = vpack.c.b16 %v509, %v508
        %v523 = vpack.c.b16 %v511, %v510
        %v524 = vpack.c.b16 %v513, %v512
        %v525 = vpack.c.b16 %v515, %v514
        %v526 = vpack.c.b16 %v517, %v516
        %v527 = vpack.c.b16 %v519, %v518
        %536 = vmatprep.subr.bf16.mxu0 0
        %537 = vmatpush1.bf16.msra.mxu0 %v520
        %538 = vmatprep.subr.bf16.mxu0 0
        %539 = vmatpush1.bf16.msra.mxu0 %v521
        %540 = vmatprep.subr.bf16.mxu0 0
        %541 = vmatpush1.bf16.msra.mxu0 %v522
        %542 = vmatprep.subr.bf16.mxu0 0
        %543 = vmatpush1.bf16.msra.mxu0 %v523
        %544 = vmatprep.subr.bf16.mxu0 0
        %545 = vmatpush1.bf16.msra.mxu0 %v524
        %546 = vmatprep.subr.bf16.mxu0 0
        %547 = vmatpush1.bf16.msra.mxu0 %v525
        %548 = vmatprep.subr.bf16.mxu0 0
        %549 = vmatpush1.bf16.msra.mxu0 %v526
        %550 = vmatprep.subr.bf16.mxu0 0
        %551 = vmatpush1.bf16.msra.mxu0 %v527
        %552 = vmatprep.subr.bf16.mxu0 0
        %553 = vmatpush1.bf16.msra.mxu0 0
        %554 = vmatprep.subr.bf16.mxu0 0
        %555 = vmatpush1.bf16.msra.mxu0 0
        %556 = vmatprep.subr.bf16.mxu0 0
        %557 = vmatpush1.bf16.msra.mxu0 0
        %558 = vmatprep.subr.bf16.mxu0 0
        %559 = vmatpush1.bf16.msra.mxu0 0
        %560 = vmatprep.subr.bf16.mxu0 0
        %561 = vmatpush1.bf16.msra.mxu0 0
        %562 = vmatprep.subr.bf16.mxu0 0
        %563 = vmatpush1.bf16.msra.mxu0 0
        %564 = vmatprep.subr.bf16.mxu0 0
        %565 = vmatpush1.bf16.msra.mxu0 0
        %566 = vmatprep.subr.bf16.mxu0 0
        %567 = vmatpush1.bf16.msra.mxu0 0
        %568 = vmatprep.mubr.bf16.mxu0 0
        %569 = vmatmul.mubr.bf16.gmra.mrb[0].mxu0 %v424
        %v570 = vpop.f32.mrb[0].mxu0
        %v571 = vadd.f32 0.0, %v570
        %v572 = vpop.f32.mrb[0].mxu0
        %v573 = vpop.f32.mrb[0].mxu0
        %v574 = vadd.f32 0.0, %v573
        %v575 = vpop.f32.mrb[0].mxu0
        %576 = vmatprep.mubr.bf16.mxu0 0
        %577 = vmatmul.mubr.bf16.gmra.mrb[0].mxu0 %v425
        %v578 = vpop.f32.mrb[0].mxu0
        %v579 = vadd.f32 0.0, %v578
        %v580 = vpop.f32.mrb[0].mxu0
        %v581 = vpop.f32.mrb[0].mxu0
        %v582 = vadd.f32 0.0, %v581
        %v583 = vpop.f32.mrb[0].mxu0
        %584 = vmatprep.mubr.bf16.mxu0 0
        %585 = vmatmul.mubr.bf16.gmra.mrb[0].mxu0 %v426
        %v586 = vpop.f32.mrb[0].mxu0
        %v587 = vadd.f32 0.0, %v586
        %v588 = vpop.f32.mrb[0].mxu0
        %v589 = vpop.f32.mrb[0].mxu0
        %v590 = vadd.f32 0.0, %v589
        %v591 = vpop.f32.mrb[0].mxu0
        %592 = vmatprep.mubr.bf16.mxu0 0
        %593 = vmatmul.mubr.bf16.gmra.mrb[0].mxu0 %v427
        %v594 = vpop.f32.mrb[0].mxu0
        %v595 = vadd.f32 0.0, %v594
        %v596 = vpop.f32.mrb[0].mxu0
        %v597 = vpop.f32.mrb[0].mxu0
        %v598 = vadd.f32 0.0, %v597
        %v599 = vpop.f32.mrb[0].mxu0
        %600 = vmatprep.mubr.bf16.mxu0 0
        %601 = vmatmul.mubr.bf16.gmra.mrb[0].mxu0 %v428
        %v602 = vpop.f32.mrb[0].mxu0
        %v603 = vadd.f32 0.0, %v602
        %v604 = vpop.f32.mrb[0].mxu0
        %v605 = vpop.f32.mrb[0].mxu0
        %v606 = vadd.f32 0.0, %v605
        %v607 = vpop.f32.mrb[0].mxu0
        %608 = vmatprep.mubr.bf16.mxu0 0
        %609 = vmatmul.mubr.bf16.gmra.mrb[0].mxu0 %v429
        %v610 = vpop.f32.mrb[0].mxu0
        %v611 = vadd.f32 0.0, %v610
        %v612 = vpop.f32.mrb[0].mxu0
        %v613 = vpop.f32.mrb[0].mxu0
        %v614 = vadd.f32 0.0, %v613
        %v615 = vpop.f32.mrb[0].mxu0
        %616 = vmatprep.mubr.bf16.mxu0 0
        %617 = vmatmul.mubr.bf16.gmra.mrb[0].mxu0 %v430
        %v618 = vpop.f32.mrb[0].mxu0
        %v619 = vadd.f32 0.0, %v618
        %v620 = vpop.f32.mrb[0].mxu0
        %v621 = vpop.f32.mrb[0].mxu0
        %v622 = vadd.f32 0.0, %v621
        %v623 = vpop.f32.mrb[0].mxu0
        %624 = vmatprep.mubr.bf16.mxu0 0
        %625 = vmatmul.mubr.bf16.gmra.mrb[0].mxu0 %v431
        %v626 = vpop.f32.mrb[0].mxu0
        %v627 = vadd.f32 0.0, %v626
        %v628 = vpop.f32.mrb[0].mxu0
        %v629 = vpop.f32.mrb[0].mxu0
        %v630 = vadd.f32 0.0, %v629
        %v631 = vpop.f32.mrb[0].mxu0
        %632 = vmatprep.mubr.bf16.mxu0 0
        %633 = vmatmul.mubr.bf16.gmra.mrb[0].mxu0 %v432
        %v634 = vpop.f32.mrb[0].mxu0
        %v635 = vadd.f32 0.0, %v634
        %v636 = vpop.f32.mrb[0].mxu0
        %v637 = vpop.f32.mrb[0].mxu0
        %v638 = vadd.f32 0.0, %v637
        %v639 = vpop.f32.mrb[0].mxu0
        %640 = vmatprep.mubr.bf16.mxu0 0
        %641 = vmatmul.mubr.bf16.gmra.mrb[0].mxu0 %v433
        %v642 = vpop.f32.mrb[0].mxu0
        %v643 = vadd.f32 0.0, %v642
        %v644 = vpop.f32.mrb[0].mxu0
        %v645 = vpop.f32.mrb[0].mxu0
        %v646 = vadd.f32 0.0, %v645
        %v647 = vpop.f32.mrb[0].mxu0
        %648 = vmatprep.mubr.bf16.mxu0 0
        %649 = vmatmul.mubr.bf16.gmra.mrb[0].mxu0 %v434
        %v650 = vpop.f32.mrb[0].mxu0
        %v651 = vadd.f32 0.0, %v650
        %v652 = vpop.f32.mrb[0].mxu0
        %v653 = vpop.f32.mrb[0].mxu0
        %v654 = vadd.f32 0.0, %v653
        %v655 = vpop.f32.mrb[0].mxu0
        %656 = vmatprep.mubr.bf16.mxu0 0
        %657 = vmatmul.mubr.bf16.gmra.mrb[0].mxu0 %v435
        %v658 = vpop.f32.mrb[0].mxu0
        %v659 = vadd.f32 0.0, %v658
        %v660 = vpop.f32.mrb[0].mxu0
        %v661 = vpop.f32.mrb[0].mxu0
        %v662 = vadd.f32 0.0, %v661
        %v663 = vpop.f32.mrb[0].mxu0
        %664 = vmatprep.mubr.bf16.mxu0 0
        %665 = vmatmul.mubr.bf16.gmra.mrb[0].mxu0 %v436
        %v666 = vpop.f32.mrb[0].mxu0
        %v667 = vadd.f32 0.0, %v666
        %v668 = vpop.f32.mrb[0].mxu0
        %v669 = vpop.f32.mrb[0].mxu0
        %v670 = vadd.f32 0.0, %v669
        %v671 = vpop.f32.mrb[0].mxu0
        %672 = vmatprep.mubr.bf16.mxu0 0
        %673 = vmatmul.mubr.bf16.gmra.mrb[0].mxu0 %v437
        %v674 = vpop.f32.mrb[0].mxu0
        %v675 = vadd.f32 0.0, %v674
        %v676 = vpop.f32.mrb[0].mxu0
        %v677 = vpop.f32.mrb[0].mxu0
        %v678 = vadd.f32 0.0, %v677
        %v679 = vpop.f32.mrb[0].mxu0
        %680 = vmatprep.mubr.bf16.mxu0 0
        %681 = vmatmul.mubr.bf16.gmra.mrb[0].mxu0 %v438
        %v682 = vpop.f32.mrb[0].mxu0
        %v683 = vadd.f32 0.0, %v682
        %v684 = vpop.f32.mrb[0].mxu0
        %v685 = vpop.f32.mrb[0].mxu0
        %v686 = vadd.f32 0.0, %v685
        %v687 = vpop.f32.mrb[0].mxu0
        %688 = vmatprep.mubr.bf16.mxu0 0
        %689 = vmatmul.mubr.bf16.gmra.mrb[0].mxu0 %v439
        %v690 = vpop.f32.mrb[0].mxu0
        %v691 = vadd.f32 0.0, %v690
        %v692 = vpop.f32.mrb[0].mxu0
        %v693 = vpop.f32.mrb[0].mxu0
        %v694 = vadd.f32 0.0, %v693
        %v695 = vpop.f32.mrb[0].mxu0
        %696 = vmatprep.mubr.bf16.mxu0 0
        %697 = vmatmul.mubr.bf16.gmra.mrb[0].mxu0 %v440
        %v698 = vpop.f32.mrb[0].mxu0
        %v699 = vadd.f32 0.0, %v698
        %v700 = vpop.f32.mrb[0].mxu0
        %v701 = vpop.f32.mrb[0].mxu0
        %v702 = vadd.f32 0.0, %v701
        %v703 = vpop.f32.mrb[0].mxu0
        %704 = vmatprep.mubr.bf16.mxu0 0
        %705 = vmatmul.mubr.bf16.gmra.mrb[0].mxu0 %v441
        %v706 = vpop.f32.mrb[0].mxu0
        %v707 = vadd.f32 0.0, %v706
        %v708 = vpop.f32.mrb[0].mxu0
        %v709 = vpop.f32.mrb[0].mxu0
        %v710 = vadd.f32 0.0, %v709
        %v711 = vpop.f32.mrb[0].mxu0
        %712 = vmatprep.mubr.bf16.mxu0 0
        %713 = vmatmul.mubr.bf16.gmra.mrb[0].mxu0 %v442
        %v714 = vpop.f32.mrb[0].mxu0
        %v715 = vadd.f32 0.0, %v714
        %v716 = vpop.f32.mrb[0].mxu0
        %v717 = vpop.f32.mrb[0].mxu0
        %v718 = vadd.f32 0.0, %v717
        %v719 = vpop.f32.mrb[0].mxu0
        %720 = vmatprep.mubr.bf16.mxu0 0
        %721 = vmatmul.mubr.bf16.gmra.mrb[0].mxu0 %v443
        %v722 = vpop.f32.mrb[0].mxu0
        %v723 = vadd.f32 0.0, %v722
        %v724 = vpop.f32.mrb[0].mxu0
        %v725 = vpop.f32.mrb[0].mxu0
        %v726 = vadd.f32 0.0, %v725
        %v727 = vpop.f32.mrb[0].mxu0
        %728 = vmatprep.mubr.bf16.mxu0 0
        %729 = vmatmul.mubr.bf16.gmra.mrb[0].mxu0 %v444
        %v730 = vpop.f32.mrb[0].mxu0
        %v731 = vadd.f32 0.0, %v730
        %v732 = vpop.f32.mrb[0].mxu0
        %v733 = vpop.f32.mrb[0].mxu0
        %v734 = vadd.f32 0.0, %v733
        %v735 = vpop.f32.mrb[0].mxu0
        %736 = vmatprep.mubr.bf16.mxu0 0
        %737 = vmatmul.mubr.bf16.gmra.mrb[0].mxu0 %v445
        %v738 = vpop.f32.mrb[0].mxu0
        %v739 = vadd.f32 0.0, %v738
        %v740 = vpop.f32.mrb[0].mxu0
        %v741 = vpop.f32.mrb[0].mxu0
        %v742 = vadd.f32 0.0, %v741
        %v743 = vpop.f32.mrb[0].mxu0
        %744 = vmatprep.mubr.bf16.mxu0 0
        %745 = vmatmul.mubr.bf16.gmra.mrb[0].mxu0 %v446
        %v746 = vpop.f32.mrb[0].mxu0
        %v747 = vadd.f32 0.0, %v746
        %v748 = vpop.f32.mrb[0].mxu0
        %v749 = vpop.f32.mrb[0].mxu0
        %v750 = vadd.f32 0.0, %v749
        %v751 = vpop.f32.mrb[0].mxu0
        %752 = vmatprep.mubr.bf16.mxu0 0
        %753 = vmatmul.mubr.bf16.gmra.mrb[0].mxu0 %v447
        %v754 = vpop.f32.mrb[0].mxu0
        %v755 = vadd.f32 0.0, %v754
        %v756 = vpop.f32.mrb[0].mxu0
        %v757 = vpop.f32.mrb[0].mxu0
        %v758 = vadd.f32 0.0, %v757
        %v759 = vpop.f32.mrb[0].mxu0
        %760 = vmatprep.mubr.bf16.mxu0 0
        %761 = vmatmul.mubr.bf16.gmra.mrb[0].mxu0 %v448
        %v762 = vpop.f32.mrb[0].mxu0
        %v763 = vadd.f32 0.0, %v762
        %v764 = vpop.f32.mrb[0].mxu0
        %v765 = vpop.f32.mrb[0].mxu0
        %v766 = vadd.f32 0.0, %v765
        %v767 = vpop.f32.mrb[0].mxu0
        %768 = vmatprep.mubr.bf16.mxu0 0
        %769 = vmatmul.mubr.bf16.gmra.mrb[0].mxu0 %v449
        %v770 = vpop.f32.mrb[0].mxu0
        %v771 = vadd.f32 0.0, %v770
        %v772 = vpop.f32.mrb[0].mxu0
        %v773 = vpop.f32.mrb[0].mxu0
        %v774 = vadd.f32 0.0, %v773
        %v775 = vpop.f32.mrb[0].mxu0
        %776 = vmatprep.mubr.bf16.mxu0 0
        %777 = vmatmul.mubr.bf16.gmra.mrb[0].mxu0 %v450
        %v778 = vpop.f32.mrb[0].mxu0
        %v779 = vadd.f32 0.0, %v778
        %v780 = vpop.f32.mrb[0].mxu0
        %v781 = vpop.f32.mrb[0].mxu0
        %v782 = vadd.f32 0.0, %v781
        %v783 = vpop.f32.mrb[0].mxu0
        %784 = vmatprep.mubr.bf16.mxu0 0
        %785 = vmatmul.mubr.bf16.gmra.mrb[0].mxu0 %v451
        %v786 = vpop.f32.mrb[0].mxu0
        %v787 = vadd.f32 0.0, %v786
        %v788 = vpop.f32.mrb[0].mxu0
        %v789 = vpop.f32.mrb[0].mxu0
        %v790 = vadd.f32 0.0, %v789
        %v791 = vpop.f32.mrb[0].mxu0
        %792 = vmatprep.mubr.bf16.mxu0 0
        %793 = vmatmul.mubr.bf16.gmra.mrb[0].mxu0 %v452
        %v794 = vpop.f32.mrb[0].mxu0
        %v795 = vadd.f32 0.0, %v794
        %v796 = vpop.f32.mrb[0].mxu0
        %v797 = vpop.f32.mrb[0].mxu0
        %v798 = vadd.f32 0.0, %v797
        %v799 = vpop.f32.mrb[0].mxu0
        %800 = vmatprep.mubr.bf16.mxu0 0
        %801 = vmatmul.mubr.bf16.gmra.mrb[0].mxu0 %v453
        %v802 = vpop.f32.mrb[0].mxu0
        %v803 = vadd.f32 0.0, %v802
        %v804 = vpop.f32.mrb[0].mxu0
        %v805 = vpop.f32.mrb[0].mxu0
        %v806 = vadd.f32 0.0, %v805
        %v807 = vpop.f32.mrb[0].mxu0
        %808 = vmatprep.mubr.bf16.mxu0 0
        %809 = vmatmul.mubr.bf16.gmra.mrb[0].mxu0 %v454
        %v810 = vpop.f32.mrb[0].mxu0
        %v811 = vadd.f32 0.0, %v810
        %v812 = vpop.f32.mrb[0].mxu0
        %v813 = vpop.f32.mrb[0].mxu0
        %v814 = vadd.f32 0.0, %v813
        %v815 = vpop.f32.mrb[0].mxu0
        %816 = vmatprep.mubr.bf16.mxu0 0
        %817 = vmatmul.mubr.bf16.gmra.mrb[0].mxu0 %v455
        %v818 = vpop.f32.mrb[0].mxu0
        %v819 = vadd.f32 0.0, %v818
        %v820 = vpop.f32.mrb[0].mxu0
        %v821 = vpop.f32.mrb[0].mxu0
        %v822 = vadd.f32 0.0, %v821
        %v823 = vpop.f32.mrb[0].mxu0
        %824 = vdwg.mxu0
        %v825 = vld [vmem:[#allocation3] sm:$0x1]
        %v826 = vadd.f32 %v571, %v574
        %v827 = vadd.f32 %v826, %v579
        %v828 = vadd.f32 %v827, %v582
        %v829 = vadd.f32 %v828, %v587
        %v830 = vadd.f32 %v829, %v590
        %v831 = vadd.f32 %v830, %v595
        %v832 = vadd.f32 %v831, %v598
        %v833 = vadd.f32 %v832, %v603
        %v834 = vadd.f32 %v833, %v606
        %v835 = vadd.f32 %v834, %v611
        %v836 = vadd.f32 %v835, %v614
        %v837 = vadd.f32 %v836, %v619
        %v838 = vadd.f32 %v837, %v622
        %v839 = vadd.f32 %v838, %v627
        %v840 = vadd.f32 %v839, %v630
        %v841 = vadd.f32 %v840, %v635
        %v842 = vadd.f32 %v841, %v638
        %v843 = vadd.f32 %v842, %v643
        %v844 = vadd.f32 %v843, %v646
        %v845 = vadd.f32 %v844, %v651
        %v846 = vadd.f32 %v845, %v654
        %v847 = vadd.f32 %v846, %v659
        %v848 = vadd.f32 %v847, %v662
        %v849 = vadd.f32 %v848, %v667
        %v850 = vadd.f32 %v849, %v670
        %v851 = vadd.f32 %v850, %v675
        %v852 = vadd.f32 %v851, %v678
        %v853 = vadd.f32 %v852, %v683
        %v854 = vadd.f32 %v853, %v686
        %v855 = vadd.f32 %v854, %v691
        %v856 = vadd.f32 %v855, %v694
        %v857 = vadd.f32 %v856, %v699
        %v858 = vadd.f32 %v857, %v702
        %v859 = vadd.f32 %v858, %v707
        %v860 = vadd.f32 %v859, %v710
        %v861 = vadd.f32 %v860, %v715
        %v862 = vadd.f32 %v861, %v718
        %v863 = vadd.f32 %v862, %v723
        %v864 = vadd.f32 %v863, %v726
        %v865 = vadd.f32 %v864, %v731
        %v866 = vadd.f32 %v865, %v734
        %v867 = vadd.f32 %v866, %v739
        %v868 = vadd.f32 %v867, %v742
        %v869 = vadd.f32 %v868, %v747
        %v870 = vadd.f32 %v869, %v750
        %v871 = vadd.f32 %v870, %v755
        %v872 = vadd.f32 %v871, %v758
        %v873 = vadd.f32 %v872, %v763
        %v874 = vadd.f32 %v873, %v766
        %v875 = vadd.f32 %v874, %v771
        %v876 = vadd.f32 %v875, %v774
        %v877 = vadd.f32 %v876, %v779
        %v878 = vadd.f32 %v877, %v782
        %v879 = vadd.f32 %v878, %v787
        %v880 = vadd.f32 %v879, %v790
        %v881 = vadd.f32 %v880, %v795
        %v882 = vadd.f32 %v881, %v798
        %v883 = vadd.f32 %v882, %v803
        %v884 = vadd.f32 %v883, %v806
        %v885 = vadd.f32 %v884, %v811
        %v886 = vadd.f32 %v885, %v814
        %v887 = vadd.f32 %v886, %v819
        %v888 = vadd.f32 %v887, %v822
        %v889 = vrot.slane %v888, 4
        %v890 = vadd.f32 %v888, %v889
        %v891 = vrot.slane %v890, 2
        %v892 = vadd.f32 %v890, %v891
        %v893 = vrot.slane %v892, 1
        %v894 = vadd.f32 %v892, %v893
        %v895 = vadd.f32 %v825, %v894
        %896 = vst [vmem:[#allocation3] sm:$0x1] %v895
        %v897 = vld [vmem:[#allocation3 + $0x1] sm:$0x1]
        %v898 = vmul.f32 %v571, %v571
        %v899 = vmul.f32 %v574, %v574
        %v900 = vmul.f32 %v579, %v579
        %v901 = vmul.f32 %v582, %v582
        %v902 = vmul.f32 %v587, %v587
        %v903 = vmul.f32 %v590, %v590
        %v904 = vmul.f32 %v595, %v595
        %v905 = vmul.f32 %v598, %v598
        %v906 = vmul.f32 %v603, %v603
        %v907 = vmul.f32 %v606, %v606
        %v908 = vmul.f32 %v611, %v611
        %v909 = vmul.f32 %v614, %v614
        %v910 = vmul.f32 %v619, %v619
        %v911 = vmul.f32 %v622, %v622
        %v912 = vmul.f32 %v627, %v627
        %v913 = vmul.f32 %v630, %v630
        %v914 = vmul.f32 %v635, %v635
        %v915 = vmul.f32 %v638, %v638
        %v916 = vmul.f32 %v643, %v643
        %v917 = vmul.f32 %v646, %v646
        %v918 = vmul.f32 %v651, %v651
        %v919 = vmul.f32 %v654, %v654
        %v920 = vmul.f32 %v659, %v659
        %v921 = vmul.f32 %v662, %v662
        %v922 = vmul.f32 %v667, %v667
        %v923 = vmul.f32 %v670, %v670
        %v924 = vmul.f32 %v675, %v675
        %v925 = vmul.f32 %v678, %v678
        %v926 = vmul.f32 %v683, %v683
        %v927 = vmul.f32 %v686, %v686
        %v928 = vmul.f32 %v691, %v691
        %v929 = vmul.f32 %v694, %v694
        %v930 = vmul.f32 %v699, %v699
        %v931 = vmul.f32 %v702, %v702
        %v932 = vmul.f32 %v707, %v707
        %v933 = vmul.f32 %v710, %v710
        %v934 = vmul.f32 %v715, %v715
        %v935 = vmul.f32 %v718, %v718
        %v936 = vmul.f32 %v723, %v723
        %v937 = vmul.f32 %v726, %v726
        %v938 = vmul.f32 %v731, %v731
        %v939 = vmul.f32 %v734, %v734
        %v940 = vmul.f32 %v739, %v739
        %v941 = vmul.f32 %v742, %v742
        %v942 = vmul.f32 %v747, %v747
        %v943 = vmul.f32 %v750, %v750
        %v944 = vmul.f32 %v755, %v755
        %v945 = vmul.f32 %v758, %v758
        %v946 = vmul.f32 %v763, %v763
        %v947 = vmul.f32 %v766, %v766
        %v948 = vmul.f32 %v771, %v771
        %v949 = vmul.f32 %v774, %v774
        %v950 = vmul.f32 %v779, %v779
        %v951 = vmul.f32 %v782, %v782
        %v952 = vmul.f32 %v787, %v787
        %v953 = vmul.f32 %v790, %v790
        %v954 = vmul.f32 %v795, %v795
        %v955 = vmul.f32 %v798, %v798
        %v956 = vmul.f32 %v803, %v803
        %v957 = vmul.f32 %v806, %v806
        %v958 = vmul.f32 %v811, %v811
        %v959 = vmul.f32 %v814, %v814
        %v960 = vmul.f32 %v819, %v819
        %v961 = vmul.f32 %v822, %v822
        %v962 = vadd.f32 %v898, %v899
        %v963 = vadd.f32 %v962, %v900
        %v964 = vadd.f32 %v963, %v901
        %v965 = vadd.f32 %v964, %v902
        %v966 = vadd.f32 %v965, %v903
        %v967 = vadd.f32 %v966, %v904
        %v968 = vadd.f32 %v967, %v905
        %v969 = vadd.f32 %v968, %v906
        %v970 = vadd.f32 %v969, %v907
        %v971 = vadd.f32 %v970, %v908
        %v972 = vadd.f32 %v971, %v909
        %v973 = vadd.f32 %v972, %v910
        %v974 = vadd.f32 %v973, %v911
        %v975 = vadd.f32 %v974, %v912
        %v976 = vadd.f32 %v975, %v913
        %v977 = vadd.f32 %v976, %v914
        %v978 = vadd.f32 %v977, %v915
        %v979 = vadd.f32 %v978, %v916
        %v980 = vadd.f32 %v979, %v917
        %v981 = vadd.f32 %v980, %v918
        %v982 = vadd.f32 %v981, %v919
        %v983 = vadd.f32 %v982, %v920
        %v984 = vadd.f32 %v983, %v921
        %v985 = vadd.f32 %v984, %v922
        %v986 = vadd.f32 %v985, %v923
        %v987 = vadd.f32 %v986, %v924
        %v988 = vadd.f32 %v987, %v925
        %v989 = vadd.f32 %v988, %v926
        %v990 = vadd.f32 %v989, %v927
        %v991 = vadd.f32 %v990, %v928
        %v992 = vadd.f32 %v991, %v929
        %v993 = vadd.f32 %v992, %v930
        %v994 = vadd.f32 %v993, %v931
        %v995 = vadd.f32 %v994, %v932
        %v996 = vadd.f32 %v995, %v933
        %v997 = vadd.f32 %v996, %v934
        %v998 = vadd.f32 %v997, %v935
        %v999 = vadd.f32 %v998, %v936
        %v1000 = vadd.f32 %v999, %v937
        %v1001 = vadd.f32 %v1000, %v938
        %v1002 = vadd.f32 %v1001, %v939
        %v1003 = vadd.f32 %v1002, %v940
        %v1004 = vadd.f32 %v1003, %v941
        %v1005 = vadd.f32 %v1004, %v942
        %v1006 = vadd.f32 %v1005, %v943
        %v1007 = vadd.f32 %v1006, %v944
        %v1008 = vadd.f32 %v1007, %v945
        %v1009 = vadd.f32 %v1008, %v946
        %v1010 = vadd.f32 %v1009, %v947
        %v1011 = vadd.f32 %v1010, %v948
        %v1012 = vadd.f32 %v1011, %v949
        %v1013 = vadd.f32 %v1012, %v950
        %v1014 = vadd.f32 %v1013, %v951
        %v1015 = vadd.f32 %v1014, %v952
        %v1016 = vadd.f32 %v1015, %v953
        %v1017 = vadd.f32 %v1016, %v954
        %v1018 = vadd.f32 %v1017, %v955
        %v1019 = vadd.f32 %v1018, %v956
        %v1020 = vadd.f32 %v1019, %v957
        %v1021 = vadd.f32 %v1020, %v958
        %v1022 = vadd.f32 %v1021, %v959
        %v1023 = vadd.f32 %v1022, %v960
        %v1024 = vadd.f32 %v1023, %v961
        %v1025 = vrot.slane %v1024, 4
        %v1026 = vadd.f32 %v1024, %v1025
        %v1027 = vrot.slane %v1026, 2
        %v1028 = vadd.f32 %v1026, %v1027
        %v1029 = vrot.slane %v1028, 1
        %v1030 = vadd.f32 %v1028, %v1029
        %v1031 = vadd.f32 %v897, %v1030
        %1032 = vst [vmem:[#allocation3 + $0x1] sm:$0x1] %v1031
        %s1033 = smul.u32 %s19, 512
        %v1034 = vpack.c.bf16 %v574, %v571
        %v1035 = vpack.c.bf16 %v582, %v579
        %v1036 = vpack.c.bf16 %v590, %v587
        %v1037 = vpack.c.bf16 %v598, %v595
        %v1038 = vpack.c.bf16 %v606, %v603
        %v1039 = vpack.c.bf16 %v614, %v611
        %v1040 = vpack.c.bf16 %v622, %v619
        %v1041 = vpack.c.bf16 %v630, %v627
        %v1042 = vpack.c.bf16 %v638, %v635
        %v1043 = vpack.c.bf16 %v646, %v643
        %v1044 = vpack.c.bf16 %v654, %v651
        %v1045 = vpack.c.bf16 %v662, %v659
        %v1046 = vpack.c.bf16 %v670, %v667
        %v1047 = vpack.c.bf16 %v678, %v675
        %v1048 = vpack.c.bf16 %v686, %v683
        %v1049 = vpack.c.bf16 %v694, %v691
        %v1050 = vpack.c.bf16 %v702, %v699
        %v1051 = vpack.c.bf16 %v710, %v707
        %v1052 = vpack.c.bf16 %v718, %v715
        %v1053 = vpack.c.bf16 %v726, %v723
        %v1054 = vpack.c.bf16 %v734, %v731
        %v1055 = vpack.c.bf16 %v742, %v739
        %v1056 = vpack.c.bf16 %v750, %v747
        %v1057 = vpack.c.bf16 %v758, %v755
        %v1058 = vpack.c.bf16 %v766, %v763
        %v1059 = vpack.c.bf16 %v774, %v771
        %v1060 = vpack.c.bf16 %v782, %v779
        %v1061 = vpack.c.bf16 %v790, %v787
        %v1062 = vpack.c.bf16 %v798, %v795
        %v1063 = vpack.c.bf16 %v806, %v803
        %v1064 = vpack.c.bf16 %v814, %v811
        %v1065 = vpack.c.bf16 %v822, %v819
        %s1066 = sshra.s32 %s1033, 4
        %s1067 = sand.u32 %s1033, 15
        %s1068 = smul.addr %s1066, 8
        %s1069 = scalar_lea.vmem [#allocation2], %s1068
        %1070 = vst [vmem:[%s1069] sm:$0xff] %v1034
        %1071 = vst [vmem:[%s1069 + $0x8] sm:$0xff] %v1035
        %1072 = vst [vmem:[%s1069 + $0x10] sm:$0xff] %v1036
        %1073 = vst [vmem:[%s1069 + $0x18] sm:$0xff] %v1037
        %1074 = vst [vmem:[%s1069 + $0x20] sm:$0xff] %v1038
        %1075 = vst [vmem:[%s1069 + $0x28] sm:$0xff] %v1039
        %1076 = vst [vmem:[%s1069 + $0x30] sm:$0xff] %v1040
        %1077 = vst [vmem:[%s1069 + $0x38] sm:$0xff] %v1041
        %1078 = vst [vmem:[%s1069 + $0x40] sm:$0xff] %v1042
        %1079 = vst [vmem:[%s1069 + $0x48] sm:$0xff] %v1043
        %1080 = vst [vmem:[%s1069 + $0x50] sm:$0xff] %v1044
        %1081 = vst [vmem:[%s1069 + $0x58] sm:$0xff] %v1045
        %1082 = vst [vmem:[%s1069 + $0x60] sm:$0xff] %v1046
        %1083 = vst [vmem:[%s1069 + $0x68] sm:$0xff] %v1047
        %1084 = vst [vmem:[%s1069 + $0x70] sm:$0xff] %v1048
        %1085 = vst [vmem:[%s1069 + $0x78] sm:$0xff] %v1049
        %1086 = vst [vmem:[%s1069 + $0x80] sm:$0xff] %v1050
        %1087 = vst [vmem:[%s1069 + $0x88] sm:$0xff] %v1051
        %1088 = vst [vmem:[%s1069 + $0x90] sm:$0xff] %v1052
        %1089 = vst [vmem:[%s1069 + $0x98] sm:$0xff] %v1053
        %1090 = vst [vmem:[%s1069 + $0xa0] sm:$0xff] %v1054
        %1091 = vst [vmem:[%s1069 + $0xa8] sm:$0xff] %v1055
        %1092 = vst [vmem:[%s1069 + $0xb0] sm:$0xff] %v1056
        %1093 = vst [vmem:[%s1069 + $0xb8] sm:$0xff] %v1057
        %1094 = vst [vmem:[%s1069 + $0xc0] sm:$0xff] %v1058
        %1095 = vst [vmem:[%s1069 + $0xc8] sm:$0xff] %v1059
        %1096 = vst [vmem:[%s1069 + $0xd0] sm:$0xff] %v1060
        %1097 = vst [vmem:[%s1069 + $0xd8] sm:$0xff] %v1061
        %1098 = vst [vmem:[%s1069 + $0xe0] sm:$0xff] %v1062
        %1099 = vst [vmem:[%s1069 + $0xe8] sm:$0xff] %v1063
        %1100 = vst [vmem:[%s1069 + $0xf0] sm:$0xff] %v1064
        %1101 = vst [vmem:[%s1069 + $0xf8] sm:$0xff] %v1065
      $region40: #{conv_block.1} parent=31 // pred_fallthru
        _
      %p1102 = scmp.eq.s32.totalorder %s18, 1
      %p1103 = pnand %p1102, %p207
      %p1104 = pneg %p1103
      // Predicated region
      $region41: #{conv_block.1} parent=31 // pred_check
        _
      $region42: #{conv_block.1} parent=31 // pred_check_branch
        %1106 = sbr.rel (%p1103) target = $region44
      $region43: #{conv_block.1} parent=31 // pred_region
        %v1107 = vld [vmem:[#allocation3] sm:$0x1]
        %v1108 = vmul.f32 %v1107, 0.001953125
        %v1109 = vld [vmem:[#allocation3 + $0x1] sm:$0x1]
        %v1110 = vmul.f32 %v1109, 0.001953125
        %v1111 = vmul.f32 %v1108, %v1108
        %v1112 = vsub.f32 %v1110, %v1111
        %v1113 = vmax.f32 %v1112, 0.0
        %v1114 = vld [vmem:[%s2] sm:$0x1]
        %v1115 = vadd.f32 %v1113, 1e-05
        %v1116 = vrsqrt.pop %v1115
        %v1117 = vmul.f32 %v1114, %v1116
        %1118 = vst [vmem:[#allocation4] sm:$0x1] %v1117
        %v1119 = vld [vmem:[%s2 + $0x1] sm:$0x1]
        %v1120 = vmul.f32 %v1108, %v1117
        %v1121 = vsub.f32 %v1119, %v1120
        %1122 = vst [vmem:[#allocation4 + $0x1] sm:$0x1] %v1121
      $region44: #{conv_block.1} parent=31 // pred_fallthru
        _
      // Predicated region
      $region45: #{conv_block.1} parent=31 // pred_check
        %p1123 = pneg %p1102
      $region46: #{conv_block.1} parent=31 // pred_check_branch
        %1125 = sbr.rel (%p1123) target = $region48
      $region47: #{conv_block.1} parent=31 // pred_region
        %s1126 = smul.u32 %s19, 512
        %s1127 = sshra.s32 %s1126, 4
        %s1128 = sand.u32 %s1126, 15
        %s1129 = smul.addr %s1127, 8
        %s1130 = scalar_lea.vmem [#allocation2], %s1129
        %v1131 = vld [vmem:[%s1130] sm:$0xff]
        %v1132 = vld [vmem:[%s1130 + $0x8] sm:$0xff]
        %v1133 = vld [vmem:[%s1130 + $0x10] sm:$0xff]
        %v1134 = vld [vmem:[%s1130 + $0x18] sm:$0xff]
        %v1135 = vld [vmem:[%s1130 + $0x20] sm:$0xff]
        %v1136 = vld [vmem:[%s1130 + $0x28] sm:$0xff]
        %v1137 = vld [vmem:[%s1130 + $0x30] sm:$0xff]
        %v1138 = vld [vmem:[%s1130 + $0x38] sm:$0xff]
        %v1139 = vld [vmem:[%s1130 + $0x40] sm:$0xff]
        %v1140 = vld [vmem:[%s1130 + $0x48] sm:$0xff]
        %v1141 = vld [vmem:[%s1130 + $0x50] sm:$0xff]
        %v1142 = vld [vmem:[%s1130 + $0x58] sm:$0xff]
        %v1143 = vld [vmem:[%s1130 + $0x60] sm:$0xff]
        %v1144 = vld [vmem:[%s1130 + $0x68] sm:$0xff]
        %v1145 = vld [vmem:[%s1130 + $0x70] sm:$0xff]
        %v1146 = vld [vmem:[%s1130 + $0x78] sm:$0xff]
        %v1147 = vld [vmem:[%s1130 + $0x80] sm:$0xff]
        %v1148 = vld [vmem:[%s1130 + $0x88] sm:$0xff]
        %v1149 = vld [vmem:[%s1130 + $0x90] sm:$0xff]
        %v1150 = vld [vmem:[%s1130 + $0x98] sm:$0xff]
        %v1151 = vld [vmem:[%s1130 + $0xa0] sm:$0xff]
        %v1152 = vld [vmem:[%s1130 + $0xa8] sm:$0xff]
        %v1153 = vld [vmem:[%s1130 + $0xb0] sm:$0xff]
        %v1154 = vld [vmem:[%s1130 + $0xb8] sm:$0xff]
        %v1155 = vld [vmem:[%s1130 + $0xc0] sm:$0xff]
        %v1156 = vld [vmem:[%s1130 + $0xc8] sm:$0xff]
        %v1157 = vld [vmem:[%s1130 + $0xd0] sm:$0xff]
        %v1158 = vld [vmem:[%s1130 + $0xd8] sm:$0xff]
        %v1159 = vld [vmem:[%s1130 + $0xe0] sm:$0xff]
        %v1160 = vld [vmem:[%s1130 + $0xe8] sm:$0xff]
        %v1161 = vld [vmem:[%s1130 + $0xf0] sm:$0xff]
        %v1162 = vld [vmem:[%s1130 + $0xf8] sm:$0xff]
        %v1163 = vunpack.c.l.bf16 %v1131
        %v1164 = vunpack.c.h.bf16 %v1131
        %v1165 = vunpack.c.l.bf16 %v1132
        %v1166 = vunpack.c.h.bf16 %v1132
        %v1167 = vunpack.c.l.bf16 %v1133
        %v1168 = vunpack.c.h.bf16 %v1133
        %v1169 = vunpack.c.l.bf16 %v1134
        %v1170 = vunpack.c.h.bf16 %v1134
        %v1171 = vunpack.c.l.bf16 %v1135
        %v1172 = vunpack.c.h.bf16 %v1135
        %v1173 = vunpack.c.l.bf16 %v1136
        %v1174 = vunpack.c.h.bf16 %v1136
        %v1175 = vunpack.c.l.bf16 %v1137
        %v1176 = vunpack.c.h.bf16 %v1137
        %v1177 = vunpack.c.l.bf16 %v1138
        %v1178 = vunpack.c.h.bf16 %v1138
        %v1179 = vunpack.c.l.bf16 %v1139
        %v1180 = vunpack.c.h.bf16 %v1139
        %v1181 = vunpack.c.l.bf16 %v1140
        %v1182 = vunpack.c.h.bf16 %v1140
        %v1183 = vunpack.c.l.bf16 %v1141
        %v1184 = vunpack.c.h.bf16 %v1141
        %v1185 = vunpack.c.l.bf16 %v1142
        %v1186 = vunpack.c.h.bf16 %v1142
        %v1187 = vunpack.c.l.bf16 %v1143
        %v1188 = vunpack.c.h.bf16 %v1143
        %v1189 = vunpack.c.l.bf16 %v1144
        %v1190 = vunpack.c.h.bf16 %v1144
        %v1191 = vunpack.c.l.bf16 %v1145
        %v1192 = vunpack.c.h.bf16 %v1145
        %v1193 = vunpack.c.l.bf16 %v1146
        %v1194 = vunpack.c.h.bf16 %v1146
        %v1195 = vunpack.c.l.bf16 %v1147
        %v1196 = vunpack.c.h.bf16 %v1147
        %v1197 = vunpack.c.l.bf16 %v1148
        %v1198 = vunpack.c.h.bf16 %v1148
        %v1199 = vunpack.c.l.bf16 %v1149
        %v1200 = vunpack.c.h.bf16 %v1149
        %v1201 = vunpack.c.l.bf16 %v1150
        %v1202 = vunpack.c.h.bf16 %v1150
        %v1203 = vunpack.c.l.bf16 %v1151
        %v1204 = vunpack.c.h.bf16 %v1151
        %v1205 = vunpack.c.l.bf16 %v1152
        %v1206 = vunpack.c.h.bf16 %v1152
        %v1207 = vunpack.c.l.bf16 %v1153
        %v1208 = vunpack.c.h.bf16 %v1153
        %v1209 = vunpack.c.l.bf16 %v1154
        %v1210 = vunpack.c.h.bf16 %v1154
        %v1211 = vunpack.c.l.bf16 %v1155
        %v1212 = vunpack.c.h.bf16 %v1155
        %v1213 = vunpack.c.l.bf16 %v1156
        %v1214 = vunpack.c.h.bf16 %v1156
        %v1215 = vunpack.c.l.bf16 %v1157
        %v1216 = vunpack.c.h.bf16 %v1157
        %v1217 = vunpack.c.l.bf16 %v1158
        %v1218 = vunpack.c.h.bf16 %v1158
        %v1219 = vunpack.c.l.bf16 %v1159
        %v1220 = vunpack.c.h.bf16 %v1159
        %v1221 = vunpack.c.l.bf16 %v1160
        %v1222 = vunpack.c.h.bf16 %v1160
        %v1223 = vunpack.c.l.bf16 %v1161
        %v1224 = vunpack.c.h.bf16 %v1161
        %v1225 = vunpack.c.l.bf16 %v1162
        %v1226 = vunpack.c.h.bf16 %v1162
        %v1227 = vld [vmem:[#allocation4] sm:$0x1]
        %v1228 = vlaneseq
        %v1229 = vshrl.u32 %v1228, 7
        %v1230 = vsub.s32 0, %v1229
        %v1231 = vrot.slane %v1227, %v1230
        %v1232 = vmul.f32 %v1163, %v1231
        %v1233 = vmul.f32 %v1164, %v1231
        %v1234 = vmul.f32 %v1165, %v1231
        %v1235 = vmul.f32 %v1166, %v1231
        %v1236 = vmul.f32 %v1167, %v1231
        %v1237 = vmul.f32 %v1168, %v1231
        %v1238 = vmul.f32 %v1169, %v1231
        %v1239 = vmul.f32 %v1170, %v1231
        %v1240 = vmul.f32 %v1171, %v1231
        %v1241 = vmul.f32 %v1172, %v1231
        %v1242 = vmul.f32 %v1173, %v1231
        %v1243 = vmul.f32 %v1174, %v1231
        %v1244 = vmul.f32 %v1175, %v1231
        %v1245 = vmul.f32 %v1176, %v1231
        %v1246 = vmul.f32 %v1177, %v1231
        %v1247 = vmul.f32 %v1178, %v1231
        %v1248 = vmul.f32 %v1179, %v1231
        %v1249 = vmul.f32 %v1180, %v1231
        %v1250 = vmul.f32 %v1181, %v1231
        %v1251 = vmul.f32 %v1182, %v1231
        %v1252 = vmul.f32 %v1183, %v1231
        %v1253 = vmul.f32 %v1184, %v1231
        %v1254 = vmul.f32 %v1185, %v1231
        %v1255 = vmul.f32 %v1186, %v1231
        %v1256 = vmul.f32 %v1187, %v1231
        %v1257 = vmul.f32 %v1188, %v1231
        %v1258 = vmul.f32 %v1189, %v1231
        %v1259 = vmul.f32 %v1190, %v1231
        %v1260 = vmul.f32 %v1191, %v1231
        %v1261 = vmul.f32 %v1192, %v1231
        %v1262 = vmul.f32 %v1193, %v1231
        %v1263 = vmul.f32 %v1194, %v1231
        %v1264 = vmul.f32 %v1195, %v1231
        %v1265 = vmul.f32 %v1196, %v1231
        %v1266 = vmul.f32 %v1197, %v1231
        %v1267 = vmul.f32 %v1198, %v1231
        %v1268 = vmul.f32 %v1199, %v1231
        %v1269 = vmul.f32 %v1200, %v1231
        %v1270 = vmul.f32 %v1201, %v1231
        %v1271 = vmul.f32 %v1202, %v1231
        %v1272 = vmul.f32 %v1203, %v1231
        %v1273 = vmul.f32 %v1204, %v1231
        %v1274 = vmul.f32 %v1205, %v1231
        %v1275 = vmul.f32 %v1206, %v1231
        %v1276 = vmul.f32 %v1207, %v1231
        %v1277 = vmul.f32 %v1208, %v1231
        %v1278 = vmul.f32 %v1209, %v1231
        %v1279 = vmul.f32 %v1210, %v1231
        %v1280 = vmul.f32 %v1211, %v1231
        %v1281 = vmul.f32 %v1212, %v1231
        %v1282 = vmul.f32 %v1213, %v1231
        %v1283 = vmul.f32 %v1214, %v1231
        %v1284 = vmul.f32 %v1215, %v1231
        %v1285 = vmul.f32 %v1216, %v1231
        %v1286 = vmul.f32 %v1217, %v1231
        %v1287 = vmul.f32 %v1218, %v1231
        %v1288 = vmul.f32 %v1219, %v1231
        %v1289 = vmul.f32 %v1220, %v1231
        %v1290 = vmul.f32 %v1221, %v1231
        %v1291 = vmul.f32 %v1222, %v1231
        %v1292 = vmul.f32 %v1223, %v1231
        %v1293 = vmul.f32 %v1224, %v1231
        %v1294 = vmul.f32 %v1225, %v1231
        %v1295 = vmul.f32 %v1226, %v1231
        %v1296 = vld [vmem:[#allocation4 + $0x1] sm:$0x1]
        %v1297 = vlaneseq
        %v1298 = vshrl.u32 %v1297, 7
        %v1299 = vsub.s32 0, %v1298
        %v1300 = vrot.slane %v1296, %v1299
        %v1301 = vadd.f32 %v1232, %v1300
        %v1302 = vadd.f32 %v1233, %v1300
        %v1303 = vadd.f32 %v1234, %v1300
        %v1304 = vadd.f32 %v1235, %v1300
        %v1305 = vadd.f32 %v1236, %v1300
        %v1306 = vadd.f32 %v1237, %v1300
        %v1307 = vadd.f32 %v1238, %v1300
        %v1308 = vadd.f32 %v1239, %v1300
        %v1309 = vadd.f32 %v1240, %v1300
        %v1310 = vadd.f32 %v1241, %v1300
        %v1311 = vadd.f32 %v1242, %v1300
        %v1312 = vadd.f32 %v1243, %v1300
        %v1313 = vadd.f32 %v1244, %v1300
        %v1314 = vadd.f32 %v1245, %v1300
        %v1315 = vadd.f32 %v1246, %v1300
        %v1316 = vadd.f32 %v1247, %v1300
        %v1317 = vadd.f32 %v1248, %v1300
        %v1318 = vadd.f32 %v1249, %v1300
        %v1319 = vadd.f32 %v1250, %v1300
        %v1320 = vadd.f32 %v1251, %v1300
        %v1321 = vadd.f32 %v1252, %v1300
        %v1322 = vadd.f32 %v1253, %v1300
        %v1323 = vadd.f32 %v1254, %v1300
        %v1324 = vadd.f32 %v1255, %v1300
        %v1325 = vadd.f32 %v1256, %v1300
        %v1326 = vadd.f32 %v1257, %v1300
        %v1327 = vadd.f32 %v1258, %v1300
        %v1328 = vadd.f32 %v1259, %v1300
        %v1329 = vadd.f32 %v1260, %v1300
        %v1330 = vadd.f32 %v1261, %v1300
        %v1331 = vadd.f32 %v1262, %v1300
        %v1332 = vadd.f32 %v1263, %v1300
        %v1333 = vadd.f32 %v1264, %v1300
        %v1334 = vadd.f32 %v1265, %v1300
        %v1335 = vadd.f32 %v1266, %v1300
        %v1336 = vadd.f32 %v1267, %v1300
        %v1337 = vadd.f32 %v1268, %v1300
        %v1338 = vadd.f32 %v1269, %v1300
        %v1339 = vadd.f32 %v1270, %v1300
        %v1340 = vadd.f32 %v1271, %v1300
        %v1341 = vadd.f32 %v1272, %v1300
        %v1342 = vadd.f32 %v1273, %v1300
        %v1343 = vadd.f32 %v1274, %v1300
        %v1344 = vadd.f32 %v1275, %v1300
        %v1345 = vadd.f32 %v1276, %v1300
        %v1346 = vadd.f32 %v1277, %v1300
        %v1347 = vadd.f32 %v1278, %v1300
        %v1348 = vadd.f32 %v1279, %v1300
        %v1349 = vadd.f32 %v1280, %v1300
        %v1350 = vadd.f32 %v1281, %v1300
        %v1351 = vadd.f32 %v1282, %v1300
        %v1352 = vadd.f32 %v1283, %v1300
        %v1353 = vadd.f32 %v1284, %v1300
        %v1354 = vadd.f32 %v1285, %v1300
        %v1355 = vadd.f32 %v1286, %v1300
        %v1356 = vadd.f32 %v1287, %v1300
        %v1357 = vadd.f32 %v1288, %v1300
        %v1358 = vadd.f32 %v1289, %v1300
        %v1359 = vadd.f32 %v1290, %v1300
        %v1360 = vadd.f32 %v1291, %v1300
        %v1361 = vadd.f32 %v1292, %v1300
        %v1362 = vadd.f32 %v1293, %v1300
        %v1363 = vadd.f32 %v1294, %v1300
        %v1364 = vadd.f32 %v1295, %v1300
        %vm1365 = vcmp.ge.f32.partialorder %v1301, 0.0
        %vm1366 = vcmp.ge.f32.partialorder %v1302, 0.0
        %vm1367 = vcmp.ge.f32.partialorder %v1303, 0.0
        %vm1368 = vcmp.ge.f32.partialorder %v1304, 0.0
        %vm1369 = vcmp.ge.f32.partialorder %v1305, 0.0
        %vm1370 = vcmp.ge.f32.partialorder %v1306, 0.0
        %vm1371 = vcmp.ge.f32.partialorder %v1307, 0.0
        %vm1372 = vcmp.ge.f32.partialorder %v1308, 0.0
        %vm1373 = vcmp.ge.f32.partialorder %v1309, 0.0
        %vm1374 = vcmp.ge.f32.partialorder %v1310, 0.0
        %vm1375 = vcmp.ge.f32.partialorder %v1311, 0.0
        %vm1376 = vcmp.ge.f32.partialorder %v1312, 0.0
        %vm1377 = vcmp.ge.f32.partialorder %v1313, 0.0
        %vm1378 = vcmp.ge.f32.partialorder %v1314, 0.0
        %vm1379 = vcmp.ge.f32.partialorder %v1315, 0.0
        %vm1380 = vcmp.ge.f32.partialorder %v1316, 0.0
        %vm1381 = vcmp.ge.f32.partialorder %v1317, 0.0
        %vm1382 = vcmp.ge.f32.partialorder %v1318, 0.0
        %vm1383 = vcmp.ge.f32.partialorder %v1319, 0.0
        %vm1384 = vcmp.ge.f32.partialorder %v1320, 0.0
        %vm1385 = vcmp.ge.f32.partialorder %v1321, 0.0
        %vm1386 = vcmp.ge.f32.partialorder %v1322, 0.0
        %vm1387 = vcmp.ge.f32.partialorder %v1323, 0.0
        %vm1388 = vcmp.ge.f32.partialorder %v1324, 0.0
        %vm1389 = vcmp.ge.f32.partialorder %v1325, 0.0
        %vm1390 = vcmp.ge.f32.partialorder %v1326, 0.0
        %vm1391 = vcmp.ge.f32.partialorder %v1327, 0.0
        %vm1392 = vcmp.ge.f32.partialorder %v1328, 0.0
        %vm1393 = vcmp.ge.f32.partialorder %v1329, 0.0
        %vm1394 = vcmp.ge.f32.partialorder %v1330, 0.0
        %vm1395 = vcmp.ge.f32.partialorder %v1331, 0.0
        %vm1396 = vcmp.ge.f32.partialorder %v1332, 0.0
        %vm1397 = vcmp.ge.f32.partialorder %v1333, 0.0
        %vm1398 = vcmp.ge.f32.partialorder %v1334, 0.0
        %vm1399 = vcmp.ge.f32.partialorder %v1335, 0.0
        %vm1400 = vcmp.ge.f32.partialorder %v1336, 0.0
        %vm1401 = vcmp.ge.f32.partialorder %v1337, 0.0
        %vm1402 = vcmp.ge.f32.partialorder %v1338, 0.0
        %vm1403 = vcmp.ge.f32.partialorder %v1339, 0.0
        %vm1404 = vcmp.ge.f32.partialorder %v1340, 0.0
        %vm1405 = vcmp.ge.f32.partialorder %v1341, 0.0
        %vm1406 = vcmp.ge.f32.partialorder %v1342, 0.0
        %vm1407 = vcmp.ge.f32.partialorder %v1343, 0.0
        %vm1408 = vcmp.ge.f32.partialorder %v1344, 0.0
        %vm1409 = vcmp.ge.f32.partialorder %v1345, 0.0
        %vm1410 = vcmp.ge.f32.partialorder %v1346, 0.0
        %vm1411 = vcmp.ge.f32.partialorder %v1347, 0.0
        %vm1412 = vcmp.ge.f32.partialorder %v1348, 0.0
        %vm1413 = vcmp.ge.f32.partialorder %v1349, 0.0
        %vm1414 = vcmp.ge.f32.partialorder %v1350, 0.0
        %vm1415 = vcmp.ge.f32.partialorder %v1351, 0.0
        %vm1416 = vcmp.ge.f32.partialorder %v1352, 0.0
        %vm1417 = vcmp.ge.f32.partialorder %v1353, 0.0
        %vm1418 = vcmp.ge.f32.partialorder %v1354, 0.0
        %vm1419 = vcmp.ge.f32.partialorder %v1355, 0.0
        %vm1420 = vcmp.ge.f32.partialorder %v1356, 0.0
        %vm1421 = vcmp.ge.f32.partialorder %v1357, 0.0
        %vm1422 = vcmp.ge.f32.partialorder %v1358, 0.0
        %vm1423 = vcmp.ge.f32.partialorder %v1359, 0.0
        %vm1424 = vcmp.ge.f32.partialorder %v1360, 0.0
        %vm1425 = vcmp.ge.f32.partialorder %v1361, 0.0
        %vm1426 = vcmp.ge.f32.partialorder %v1362, 0.0
        %vm1427 = vcmp.ge.f32.partialorder %v1363, 0.0
        %vm1428 = vcmp.ge.f32.partialorder %v1364, 0.0
        %v1429 = vmul.f32 %v1301, 0.1
        %v1430 = vmul.f32 %v1302, 0.1
        %v1431 = vmul.f32 %v1303, 0.1
        %v1432 = vmul.f32 %v1304, 0.1
        %v1433 = vmul.f32 %v1305, 0.1
        %v1434 = vmul.f32 %v1306, 0.1
        %v1435 = vmul.f32 %v1307, 0.1
        %v1436 = vmul.f32 %v1308, 0.1
        %v1437 = vmul.f32 %v1309, 0.1
        %v1438 = vmul.f32 %v1310, 0.1
        %v1439 = vmul.f32 %v1311, 0.1
        %v1440 = vmul.f32 %v1312, 0.1
        %v1441 = vmul.f32 %v1313, 0.1
        %v1442 = vmul.f32 %v1314, 0.1
        %v1443 = vmul.f32 %v1315, 0.1
        %v1444 = vmul.f32 %v1316, 0.1
        %v1445 = vmul.f32 %v1317, 0.1
        %v1446 = vmul.f32 %v1318, 0.1
        %v1447 = vmul.f32 %v1319, 0.1
        %v1448 = vmul.f32 %v1320, 0.1
        %v1449 = vmul.f32 %v1321, 0.1
        %v1450 = vmul.f32 %v1322, 0.1
        %v1451 = vmul.f32 %v1323, 0.1
        %v1452 = vmul.f32 %v1324, 0.1
        %v1453 = vmul.f32 %v1325, 0.1
        %v1454 = vmul.f32 %v1326, 0.1
        %v1455 = vmul.f32 %v1327, 0.1
        %v1456 = vmul.f32 %v1328, 0.1
        %v1457 = vmul.f32 %v1329, 0.1
        %v1458 = vmul.f32 %v1330, 0.1
        %v1459 = vmul.f32 %v1331, 0.1
        %v1460 = vmul.f32 %v1332, 0.1
        %v1461 = vmul.f32 %v1333, 0.1
        %v1462 = vmul.f32 %v1334, 0.1
        %v1463 = vmul.f32 %v1335, 0.1
        %v1464 = vmul.f32 %v1336, 0.1
        %v1465 = vmul.f32 %v1337, 0.1
        %v1466 = vmul.f32 %v1338, 0.1
        %v1467 = vmul.f32 %v1339, 0.1
        %v1468 = vmul.f32 %v1340, 0.1
        %v1469 = vmul.f32 %v1341, 0.1
        %v1470 = vmul.f32 %v1342, 0.1
        %v1471 = vmul.f32 %v1343, 0.1
        %v1472 = vmul.f32 %v1344, 0.1
        %v1473 = vmul.f32 %v1345, 0.1
        %v1474 = vmul.f32 %v1346, 0.1
        %v1475 = vmul.f32 %v1347, 0.1
        %v1476 = vmul.f32 %v1348, 0.1
        %v1477 = vmul.f32 %v1349, 0.1
        %v1478 = vmul.f32 %v1350, 0.1
        %v1479 = vmul.f32 %v1351, 0.1
        %v1480 = vmul.f32 %v1352, 0.1
        %v1481 = vmul.f32 %v1353, 0.1
        %v1482 = vmul.f32 %v1354, 0.1
        %v1483 = vmul.f32 %v1355, 0.1
        %v1484 = vmul.f32 %v1356, 0.1
        %v1485 = vmul.f32 %v1357, 0.1
        %v1486 = vmul.f32 %v1358, 0.1
        %v1487 = vmul.f32 %v1359, 0.1
        %v1488 = vmul.f32 %v1360, 0.1
        %v1489 = vmul.f32 %v1361, 0.1
        %v1490 = vmul.f32 %v1362, 0.1
        %v1491 = vmul.f32 %v1363, 0.1
        %v1492 = vmul.f32 %v1364, 0.1
        %v1493 = vsel %vm1365, %v1301, %v1429
        %v1494 = vsel %vm1366, %v1302, %v1430
        %v1495 = vsel %vm1367, %v1303, %v1431
        %v1496 = vsel %vm1368, %v1304, %v1432
        %v1497 = vsel %vm1369, %v1305, %v1433
        %v1498 = vsel %vm1370, %v1306, %v1434
        %v1499 = vsel %vm1371, %v1307, %v1435
        %v1500 = vsel %vm1372, %v1308, %v1436
        %v1501 = vsel %vm1373, %v1309, %v1437
        %v1502 = vsel %vm1374, %v1310, %v1438
        %v1503 = vsel %vm1375, %v1311, %v1439
        %v1504 = vsel %vm1376, %v1312, %v1440
        %v1505 = vsel %vm1377, %v1313, %v1441
        %v1506 = vsel %vm1378, %v1314, %v1442
        %v1507 = vsel %vm1379, %v1315, %v1443
        %v1508 = vsel %vm1380, %v1316, %v1444
        %v1509 = vsel %vm1381, %v1317, %v1445
        %v1510 = vsel %vm1382, %v1318, %v1446
        %v1511 = vsel %vm1383, %v1319, %v1447
        %v1512 = vsel %vm1384, %v1320, %v1448
        %v1513 = vsel %vm1385, %v1321, %v1449
        %v1514 = vsel %vm1386, %v1322, %v1450
        %v1515 = vsel %vm1387, %v1323, %v1451
        %v1516 = vsel %vm1388, %v1324, %v1452
        %v1517 = vsel %vm1389, %v1325, %v1453
        %v1518 = vsel %vm1390, %v1326, %v1454
        %v1519 = vsel %vm1391, %v1327, %v1455
        %v1520 = vsel %vm1392, %v1328, %v1456
        %v1521 = vsel %vm1393, %v1329, %v1457
        %v1522 = vsel %vm1394, %v1330, %v1458
        %v1523 = vsel %vm1395, %v1331, %v1459
        %v1524 = vsel %vm1396, %v1332, %v1460
        %v1525 = vsel %vm1397, %v1333, %v1461
        %v1526 = vsel %vm1398, %v1334, %v1462
        %v1527 = vsel %vm1399, %v1335, %v1463
        %v1528 = vsel %vm1400, %v1336, %v1464
        %v1529 = vsel %vm1401, %v1337, %v1465
        %v1530 = vsel %vm1402, %v1338, %v1466
        %v1531 = vsel %vm1403, %v1339, %v1467
        %v1532 = vsel %vm1404, %v1340, %v1468
        %v1533 = vsel %vm1405, %v1341, %v1469
        %v1534 = vsel %vm1406, %v1342, %v1470
        %v1535 = vsel %vm1407, %v1343, %v1471
        %v1536 = vsel %vm1408, %v1344, %v1472
        %v1537 = vsel %vm1409, %v1345, %v1473
        %v1538 = vsel %vm1410, %v1346, %v1474
        %v1539 = vsel %vm1411, %v1347, %v1475
        %v1540 = vsel %vm1412, %v1348, %v1476
        %v1541 = vsel %vm1413, %v1349, %v1477
        %v1542 = vsel %vm1414, %v1350, %v1478
        %v1543 = vsel %vm1415, %v1351, %v1479
        %v1544 = vsel %vm1416, %v1352, %v1480
        %v1545 = vsel %vm1417, %v1353, %v1481
        %v1546 = vsel %vm1418, %v1354, %v1482
        %v1547 = vsel %vm1419, %v1355, %v1483
        %v1548 = vsel %vm1420, %v1356, %v1484
        %v1549 = vsel %vm1421, %v1357, %v1485
        %v1550 = vsel %vm1422, %v1358, %v1486
        %v1551 = vsel %vm1423, %v1359, %v1487
        %v1552 = vsel %vm1424, %v1360, %v1488
        %v1553 = vsel %vm1425, %v1361, %v1489
        %v1554 = vsel %vm1426, %v1362, %v1490
        %v1555 = vsel %vm1427, %v1363, %v1491
        %v1556 = vsel %vm1428, %v1364, %v1492
        %1557 = vxpose.xlu0.b32.start [1/16] %v1493, 128
        %1558 = vxpose.xlu0.b32.cont [2/16] %v1494, 128
        %1559 = vxpose.xlu0.b32.cont [3/16] %v1495, 128
        %1560 = vxpose.xlu0.b32.cont [4/16] %v1496, 128
        %1561 = vxpose.xlu0.b32.cont [5/16] %v1497, 128
        %1562 = vxpose.xlu0.b32.cont [6/16] %v1498, 128
        %1563 = vxpose.xlu0.b32.cont [7/16] %v1499, 128
        %1564 = vxpose.xlu0.b32.cont [8/16] %v1500, 128
        %1565 = vxpose.xlu0.b32.cont [9/16] %v1501, 128
        %1566 = vxpose.xlu0.b32.cont [10/16] %v1502, 128
        %1567 = vxpose.xlu0.b32.cont [11/16] %v1503, 128
        %1568 = vxpose.xlu0.b32.cont [12/16] %v1504, 128
        %1569 = vxpose.xlu0.b32.cont [13/16] %v1505, 128
        %1570 = vxpose.xlu0.b32.cont [14/16] %v1506, 128
        %1571 = vxpose.xlu0.b32.cont [15/16] %v1507, 128
        %1572 = vxpose.xlu0.b32.end [16/16] %v1508, 128
        %v1573 = vpop.trf.xlu0
        %v1574 = vpop.trf.xlu0
        %v1575 = vpop.trf.xlu0
        %v1576 = vpop.trf.xlu0
        %v1577 = vpop.trf.xlu0
        %v1578 = vpop.trf.xlu0
        %v1579 = vpop.trf.xlu0
        %v1580 = vpop.trf.xlu0
        %v1581 = vpop.trf.xlu0
        %v1582 = vpop.trf.xlu0
        %v1583 = vpop.trf.xlu0
        %v1584 = vpop.trf.xlu0
        %v1585 = vpop.trf.xlu0
        %v1586 = vpop.trf.xlu0
        %v1587 = vpop.trf.xlu0
        %v1588 = vpop.trf.xlu0
        %1589 = vxpose.xlu0.b32.start [1/16] %v1509, 128
        %1590 = vxpose.xlu0.b32.cont [2/16] %v1510, 128
        %1591 = vxpose.xlu0.b32.cont [3/16] %v1511, 128
        %1592 = vxpose.xlu0.b32.cont [4/16] %v1512, 128
        %1593 = vxpose.xlu0.b32.cont [5/16] %v1513, 128
        %1594 = vxpose.xlu0.b32.cont [6/16] %v1514, 128
        %1595 = vxpose.xlu0.b32.cont [7/16] %v1515, 128
        %1596 = vxpose.xlu0.b32.cont [8/16] %v1516, 128
        %1597 = vxpose.xlu0.b32.cont [9/16] %v1517, 128
        %1598 = vxpose.xlu0.b32.cont [10/16] %v1518, 128
        %1599 = vxpose.xlu0.b32.cont [11/16] %v1519, 128
        %1600 = vxpose.xlu0.b32.cont [12/16] %v1520, 128
        %1601 = vxpose.xlu0.b32.cont [13/16] %v1521, 128
        %1602 = vxpose.xlu0.b32.cont [14/16] %v1522, 128
        %1603 = vxpose.xlu0.b32.cont [15/16] %v1523, 128
        %1604 = vxpose.xlu0.b32.end [16/16] %v1524, 128
        %v1605 = vpop.trf.xlu0
        %v1606 = vpop.trf.xlu0
        %v1607 = vpop.trf.xlu0
        %v1608 = vpop.trf.xlu0
        %v1609 = vpop.trf.xlu0
        %v1610 = vpop.trf.xlu0
        %v1611 = vpop.trf.xlu0
        %v1612 = vpop.trf.xlu0
        %v1613 = vpop.trf.xlu0
        %v1614 = vpop.trf.xlu0
        %v1615 = vpop.trf.xlu0
        %v1616 = vpop.trf.xlu0
        %v1617 = vpop.trf.xlu0
        %v1618 = vpop.trf.xlu0
        %v1619 = vpop.trf.xlu0
        %v1620 = vpop.trf.xlu0
        %1621 = vxpose.xlu0.b32.start [1/16] %v1525, 128
        %1622 = vxpose.xlu0.b32.cont [2/16] %v1526, 128
        %1623 = vxpose.xlu0.b32.cont [3/16] %v1527, 128
        %1624 = vxpose.xlu0.b32.cont [4/16] %v1528, 128
        %1625 = vxpose.xlu0.b32.cont [5/16] %v1529, 128
        %1626 = vxpose.xlu0.b32.cont [6/16] %v1530, 128
        %1627 = vxpose.xlu0.b32.cont [7/16] %v1531, 128
        %1628 = vxpose.xlu0.b32.cont [8/16] %v1532, 128
        %1629 = vxpose.xlu0.b32.cont [9/16] %v1533, 128
        %1630 = vxpose.xlu0.b32.cont [10/16] %v1534, 128
        %1631 = vxpose.xlu0.b32.cont [11/16] %v1535, 128
        %1632 = vxpose.xlu0.b32.cont [12/16] %v1536, 128
        %1633 = vxpose.xlu0.b32.cont [13/16] %v1537, 128
        %1634 = vxpose.xlu0.b32.cont [14/16] %v1538, 128
        %1635 = vxpose.xlu0.b32.cont [15/16] %v1539, 128
        %1636 = vxpose.xlu0.b32.end [16/16] %v1540, 128
        %v1637 = vpop.trf.xlu0
        %v1638 = vpop.trf.xlu0
        %v1639 = vpop.trf.xlu0
        %v1640 = vpop.trf.xlu0
        %v1641 = vpop.trf.xlu0
        %v1642 = vpop.trf.xlu0
        %v1643 = vpop.trf.xlu0
        %v1644 = vpop.trf.xlu0
        %v1645 = vpop.trf.xlu0
        %v1646 = vpop.trf.xlu0
        %v1647 = vpop.trf.xlu0
        %v1648 = vpop.trf.xlu0
        %v1649 = vpop.trf.xlu0
        %v1650 = vpop.trf.xlu0
        %v1651 = vpop.trf.xlu0
        %v1652 = vpop.trf.xlu0
        %1653 = vxpose.xlu0.b32.start [1/16] %v1541, 128
        %1654 = vxpose.xlu0.b32.cont [2/16] %v1542, 128
        %1655 = vxpose.xlu0.b32.cont [3/16] %v1543, 128
        %1656 = vxpose.xlu0.b32.cont [4/16] %v1544, 128
        %1657 = vxpose.xlu0.b32.cont [5/16] %v1545, 128
        %1658 = vxpose.xlu0.b32.cont [6/16] %v1546, 128
        %1659 = vxpose.xlu0.b32.cont [7/16] %v1547, 128
        %1660 = vxpose.xlu0.b32.cont [8/16] %v1548, 128
        %1661 = vxpose.xlu0.b32.cont [9/16] %v1549, 128
        %1662 = vxpose.xlu0.b32.cont [10/16] %v1550, 128
        %1663 = vxpose.xlu0.b32.cont [11/16] %v1551, 128
        %1664 = vxpose.xlu0.b32.cont [12/16] %v1552, 128
        %1665 = vxpose.xlu0.b32.cont [13/16] %v1553, 128
        %1666 = vxpose.xlu0.b32.cont [14/16] %v1554, 128
        %1667 = vxpose.xlu0.b32.cont [15/16] %v1555, 128
        %1668 = vxpose.xlu0.b32.end [16/16] %v1556, 128
        %v1669 = vpop.trf.xlu0
        %v1670 = vpop.trf.xlu0
        %v1671 = vpop.trf.xlu0
        %v1672 = vpop.trf.xlu0
        %v1673 = vpop.trf.xlu0
        %v1674 = vpop.trf.xlu0
        %v1675 = vpop.trf.xlu0
        %v1676 = vpop.trf.xlu0
        %v1677 = vpop.trf.xlu0
        %v1678 = vpop.trf.xlu0
        %v1679 = vpop.trf.xlu0
        %v1680 = vpop.trf.xlu0
        %v1681 = vpop.trf.xlu0
        %v1682 = vpop.trf.xlu0
        %v1683 = vpop.trf.xlu0
        %v1684 = vpop.trf.xlu0
        %1685 = vst [vmem:[%s202] sm:$0xff] %v1573
        %1686 = vst [vmem:[%s202 + $0x8] sm:$0xff] %v1605
        %1687 = vst [vmem:[%s202 + $0x10] sm:$0xff] %v1637
        %1688 = vst [vmem:[%s202 + $0x18] sm:$0xff] %v1669
        %1689 = vst [vmem:[%s202 + $0x20] sm:$0xff] %v1574
        %1690 = vst [vmem:[%s202 + $0x28] sm:$0xff] %v1606
        %1691 = vst [vmem:[%s202 + $0x30] sm:$0xff] %v1638
        %1692 = vst [vmem:[%s202 + $0x38] sm:$0xff] %v1670
        %1693 = vst [vmem:[%s202 + $0x40] sm:$0xff] %v1575
        %1694 = vst [vmem:[%s202 + $0x48] sm:$0xff] %v1607
        %1695 = vst [vmem:[%s202 + $0x50] sm:$0xff] %v1639
        %1696 = vst [vmem:[%s202 + $0x58] sm:$0xff] %v1671
        %1697 = vst [vmem:[%s202 + $0x60] sm:$0xff] %v1576
        %1698 = vst [vmem:[%s202 + $0x68] sm:$0xff] %v1608
        %1699 = vst [vmem:[%s202 + $0x70] sm:$0xff] %v1640
        %1700 = vst [vmem:[%s202 + $0x78] sm:$0xff] %v1672
        %1701 = vst [vmem:[%s202 + $0x80] sm:$0xff] %v1577
        %1702 = vst [vmem:[%s202 + $0x88] sm:$0xff] %v1609
        %1703 = vst [vmem:[%s202 + $0x90] sm:$0xff] %v1641
        %1704 = vst [vmem:[%s202 + $0x98] sm:$0xff] %v1673
        %1705 = vst [vmem:[%s202 + $0xa0] sm:$0xff] %v1578
        %1706 = vst [vmem:[%s202 + $0xa8] sm:$0xff] %v1610
        %1707 = vst [vmem:[%s202 + $0xb0] sm:$0xff] %v1642
        %1708 = vst [vmem:[%s202 + $0xb8] sm:$0xff] %v1674
        %1709 = vst [vmem:[%s202 + $0xc0] sm:$0xff] %v1579
        %1710 = vst [vmem:[%s202 + $0xc8] sm:$0xff] %v1611
        %1711 = vst [vmem:[%s202 + $0xd0] sm:$0xff] %v1643
        %1712 = vst [vmem:[%s202 + $0xd8] sm:$0xff] %v1675
        %1713 = vst [vmem:[%s202 + $0xe0] sm:$0xff] %v1580
        %1714 = vst [vmem:[%s202 + $0xe8] sm:$0xff] %v1612
        %1715 = vst [vmem:[%s202 + $0xf0] sm:$0xff] %v1644
        %1716 = vst [vmem:[%s202 + $0xf8] sm:$0xff] %v1676
        %1717 = vst [vmem:[%s202 + $0x100] sm:$0xff] %v1581
        %1718 = vst [vmem:[%s202 + $0x108] sm:$0xff] %v1613
        %1719 = vst [vmem:[%s202 + $0x110] sm:$0xff] %v1645
        %1720 = vst [vmem:[%s202 + $0x118] sm:$0xff] %v1677
        %1721 = vst [vmem:[%s202 + $0x120] sm:$0xff] %v1582
        %1722 = vst [vmem:[%s202 + $0x128] sm:$0xff] %v1614
        %1723 = vst [vmem:[%s202 + $0x130] sm:$0xff] %v1646
        %1724 = vst [vmem:[%s202 + $0x138] sm:$0xff] %v1678
        %1725 = vst [vmem:[%s202 + $0x140] sm:$0xff] %v1583
        %1726 = vst [vmem:[%s202 + $0x148] sm:$0xff] %v1615
        %1727 = vst [vmem:[%s202 + $0x150] sm:$0xff] %v1647
        %1728 = vst [vmem:[%s202 + $0x158] sm:$0xff] %v1679
        %1729 = vst [vmem:[%s202 + $0x160] sm:$0xff] %v1584
        %1730 = vst [vmem:[%s202 + $0x168] sm:$0xff] %v1616
        %1731 = vst [vmem:[%s202 + $0x170] sm:$0xff] %v1648
        %1732 = vst [vmem:[%s202 + $0x178] sm:$0xff] %v1680
        %1733 = vst [vmem:[%s202 + $0x180] sm:$0xff] %v1585
        %1734 = vst [vmem:[%s202 + $0x188] sm:$0xff] %v1617
        %1735 = vst [vmem:[%s202 + $0x190] sm:$0xff] %v1649
        %1736 = vst [vmem:[%s202 + $0x198] sm:$0xff] %v1681
        %1737 = vst [vmem:[%s202 + $0x1a0] sm:$0xff] %v1586
        %1738 = vst [vmem:[%s202 + $0x1a8] sm:$0xff] %v1618
        %1739 = vst [vmem:[%s202 + $0x1b0] sm:$0xff] %v1650
        %1740 = vst [vmem:[%s202 + $0x1b8] sm:$0xff] %v1682
        %1741 = vst [vmem:[%s202 + $0x1c0] sm:$0xff] %v1587
        %1742 = vst [vmem:[%s202 + $0x1c8] sm:$0xff] %v1619
        %1743 = vst [vmem:[%s202 + $0x1d0] sm:$0xff] %v1651
        %1744 = vst [vmem:[%s202 + $0x1d8] sm:$0xff] %v1683
        %1745 = vst [vmem:[%s202 + $0x1e0] sm:$0xff] %v1588
        %1746 = vst [vmem:[%s202 + $0x1e8] sm:$0xff] %v1620
        %1747 = vst [vmem:[%s202 + $0x1f0] sm:$0xff] %v1652
        %1748 = vst [vmem:[%s202 + $0x1f8] sm:$0xff] %v1684
      $region48: #{conv_block.1} parent=31 // pred_fallthru
        _
      %s1749 = smul.u32 %s19, %s18
      %s1750 = smul.u32 4, %s1749
      %p1751 = scmp.lt.s32.totalorder %s1750, 3
      %s1752 = scalar_select %p1751, %s1750, 3
      %s1753 = smul.addr %s1752, 8
      %s1754 = scalar_lea.vmem %s3, %s1753
      // Predicated region
      $region49: #{conv_block.1} parent=31 // pred_check
        %p1755 = pneg %p118
      $region50: #{conv_block.1} parent=31 // pred_check_branch
        %1757 = sbr.rel (%p1755) target = $region52
      $region51: #{conv_block.1} parent=31 // pred_region
        %s1758 = smul.u32 %s19, %s18
        %s1759 = smul.u32 4, %s1758
      $region52: #{conv_block.1} parent=31 // pred_fallthru
        _
    $region32: #{conv_block.1} parent=5 // pred_fallthru
      _
    %p1760 = scmp.le.s32.totalorder 2, %s9
    // Predicated region
    $region53: #{conv_block.1} parent=5 // pred_check
      %p1761 = pneg %p1760
    $region54: #{conv_block.1} parent=5 // pred_check_branch
      %1763 = sbr.rel (%p1761) target = $region56
    $region55: #{conv_block.1} parent=5 // pred_region
      %s1764 = ssub.s32 %s9, 2
      // Predicated region
      $region57: #{conv_block.1} parent=55 // pred_check
        %p1765 = pneg %p124
      $region58: #{conv_block.1} parent=55 // pred_check_branch
        %1767 = sbr.rel (%p1765) target = $region60
      $region59: #{conv_block.1} parent=55 // pred_region
        %s1768 = smul.u32 %s21, %s20
        %s1769 = smul.u32 4, %s1768
        %p1770 = scmp.lt.s32.totalorder %s1769, 3
        %s1771 = scalar_select %p1770, %s1769, 3
        %s1772 = smul.addr %s1771, 8
        %s1773 = scalar_lea.vmem %s3, %s1772
      $region60: #{conv_block.1} parent=55 // pred_fallthru
        _
    $region56: #{conv_block.1} parent=5 // pred_fallthru
      _
  $region6: #{conv_block.1} parent=0 // loop_footer
    %s13 = sadd.s32 1, %s9
  $region7: #{conv_block.1} parent=0 // loop_footer_branch
    %8 = sbr.rel target = $region3
  $region8: #{conv_block.1} parent=0 // loop_exit
    _

</llo_original>
